<compile_context>
chip_gen: v7x
topology: tpu7x:2x2x1
jax: 0.10.0
libtpu: 0.0.40
codegen_flags: <defaults>
</compile_context>

<pallas_src>
import math

import jax
import jax.numpy as jnp
from jax.experimental import pallas as pl
from jax.experimental.pallas import tpu as pltpu

SKIP_TYPES = ['none', 'cat', 'sum', 'proj']


def _choose_thw(hw, n):
    """Lane-axis (H*W) tile: as large as possible (amortize ~0.35us/step and
    small-C DMAs), multiple of 128, while keeping an even grid-step count >= 2
    so both v7x TensorCores get work."""
    if hw % 128 == 0:
        fallback = None
        for t in (8192, 4096, 2048, 1024, 512, 256, 128):
            if t <= hw and hw % t == 0:
                steps = n * (hw // t)
                if steps >= 2 and steps % 2 == 0:
                    return t
                if fallback is None:
                    fallback = t
        if fallback is not None:
            return fallback
    # HW not a multiple of 128: full-extent block (exempt from (8,128) rule).
    return hw


def _act_spec(c, t_hw):
    # (N, C, HW) activation: squeeze N, full channel extent (OK even for C < 8
    # since full-extent dims are exempt from the (8,128) rule), tile HW on the
    # lane axis -> lane-dense, unmasked loads/stores.
    return pl.BlockSpec((None, c, t_hw), lambda ni, ji: (ni, 0, ji))


def _full_spec(shape):
    # Tiny weight / bias: single full-extent resident block.
    return pl.BlockSpec(shape, lambda ni, ji: (0,) * len(shape))


def _build_fused_kernel(program):
    """Build one kernel that runs the whole skip/layer chain on a (C, t_hw) tile.

    `program` is a static tuple of opcodes; the kernel consumes its input refs
    positionally in the same order the wrapper appended the arrays.
    """

    def kernel(*refs):
        o_ref = refs[-1]
        it = iter(refs[:-1])
        # Entry activation: load the f32 tile, cast in-register; the running
        # activation `x` is kept in f32 (epilogues in f32, bf16 only at the MXU).
        x = next(it)[...].astype(jnp.float32)
        for op in program:
            if op == 'layer':
                w = next(it)[...]
                b = next(it)[...]
                acc = jnp.dot(w, x.astype(w.dtype),
                              preferred_element_type=jnp.float32)
                x = jnp.maximum(acc + b, 0.0)
            elif op == 'cat_layer':
                # relu(W @ cat([x, xs]) + b) == relu(W1 @ x + W2 @ xs + b)
                xs = next(it)[...]
                w1 = next(it)[...]
                w2 = next(it)[...]
                b = next(it)[...]
                acc = jnp.dot(w1, x.astype(w1.dtype),
                              preferred_element_type=jnp.float32)
                acc = acc + jnp.dot(w2, xs.astype(w2.dtype),
                                    preferred_element_type=jnp.float32)
                x = jnp.maximum(acc + b, 0.0)
            elif op == 'sum_layer':
                xs = next(it)[...]
                w = next(it)[...]
                b = next(it)[...]
                h = x + xs[:x.shape[0], :].astype(jnp.float32)
                acc = jnp.dot(w, h.astype(w.dtype),
                              preferred_element_type=jnp.float32)
                x = jnp.maximum(acc + b, 0.0)
            elif op == 'proj_layer':
                xs = next(it)[...]
                wp = next(it)[...]
                w = next(it)[...]
                b = next(it)[...]
                h = x + jnp.dot(wp, xs.astype(wp.dtype),
                                preferred_element_type=jnp.float32)
                acc = jnp.dot(w, h.astype(w.dtype),
                              preferred_element_type=jnp.float32)
                x = jnp.maximum(acc + b, 0.0)
            elif op == 'end_cat':
                xs = next(it)[...].astype(jnp.float32)
                x = jnp.concatenate([x, xs], axis=0)
            elif op == 'end_sum':
                xs = next(it)[...]
                x = x + xs[:x.shape[0], :].astype(jnp.float32)
            elif op == 'end_proj':
                xs = next(it)[...]
                wp = next(it)[...]
                x = x + jnp.dot(wp, xs.astype(wp.dtype),
                                preferred_element_type=jnp.float32)
            elif op == 'end_none':
                pass
            else:
                raise ValueError(op)
        o_ref[...] = x.astype(o_ref.dtype)

    return kernel


class Decoder:
    names = ['deconv2', 'deconv3', 'upconv', 'upproj']

    def __init__(self, skip_type, additional_input_ch, layer_channels, key,
                 skip_channels=None, compute_dtype=jnp.bfloat16):
        assert skip_type in SKIP_TYPES
        self.skip_type = skip_type
        self.additional_input_ch = additional_input_ch
        self.compute_dtype = compute_dtype

        # TODO(synk): layer1..layer4 are None in the PyTorch base class (set by
        # subclasses deconv2/deconv3/upconv/upproj); substituted here with
        # deterministic 1x1-conv + ReLU stand-ins so the forward is runnable
        # (no spatial upsampling).
        keys = jax.random.split(key, 2 * len(layer_channels) + 1)
        self.layers = []
        ki = 0
        for cin, cout in layer_channels:
            lw = (jax.random.normal(keys[ki], (cout, cin), jnp.float32)
                  / math.sqrt(cin)).astype(compute_dtype)          # (Cout, Cin) bf16
            lb = (jax.random.normal(keys[ki + 1], (cout,), jnp.float32)
                  * 0.01).reshape(cout, 1)                         # f32 (Cout, 1)
            self.layers.append((lw, lb))
            ki += 2
        self._proj_key = keys[ki]
        # 1x1 projection weights keyed by (c_skip, c_x), mirroring
        # `self.proj_layers` in the PyTorch module (bias disabled, as in ref).
        self.proj_layers = {}
        # Pre-create proj weights from the known channel plan (no RNG /
        # recompiles inside forward).
        if skip_type == 'proj' and skip_channels is not None:
            x_ch = [layer_channels[0][0]] + [co for _, co in layer_channels]
            for i, cs in enumerate(skip_channels[:5]):
                if cs is not None:
                    self._get_proj(cs, x_ch[i])

    def _get_proj(self, c_skip, c_x):
        key = (c_skip, c_x)
        if key not in self.proj_layers:
            k = jax.random.fold_in(self._proj_key, c_skip * 1000 + c_x)
            self.proj_layers[key] = (
                jax.random.normal(k, (c_x, c_skip), jnp.float32)
                / math.sqrt(c_skip)).astype(self.compute_dtype)
        return self.proj_layers[key]

    def forward(self, x, x1=None, x2=None, x3=None, x4=None, x5=None):
        n, c0, h, w = x.shape
        hw = h * w
        t_hw = _choose_thw(hw, n)
        skips = [x1, x2, x3, x4, x5]
        for s in skips:
            if s is not None:
                assert s.shape[0] == n and s.shape[2] == h and s.shape[3] == w

        # Free reshapes only -- no transposes, no host-side dtype casts.
        args = [x.reshape(n, c0, hw)]
        specs = [_act_spec(c0, t_hw)]
        program = []
        cur_c = c0

        for i in range(4):
            lw, lb = self.layers[i]
            cout, cin = lw.shape
            xs = skips[i]
            if self.skip_type == 'none' or xs is None:
                assert cin == cur_c, (i, cin, cur_c)
                program.append('layer')
                args += [lw, lb]
                specs += [_full_spec(lw.shape), _full_spec(lb.shape)]
            elif self.skip_type == 'cat':
                cs = xs.shape[1]
                assert cin == cur_c + cs, (i, cin, cur_c, cs)
                program.append('cat_layer')
                args += [xs.reshape(n, cs, hw), lw[:, :cur_c], lw[:, cur_c:], lb]
                specs += [_act_spec(cs, t_hw), _full_spec((cout, cur_c)),
                          _full_spec((cout, cs)), _full_spec(lb.shape)]
            elif self.skip_type == 'sum':
                cs = xs.shape[1]
                assert cs >= cur_c and cin == cur_c, (i, cin, cur_c, cs)
                program.append('sum_layer')
                args += [xs.reshape(n, cs, hw), lw, lb]
                specs += [_act_spec(cs, t_hw), _full_spec(lw.shape),
                          _full_spec(lb.shape)]
            elif self.skip_type == 'proj':
                cs = xs.shape[1]
                assert cin == cur_c, (i, cin, cur_c)
                wp = self._get_proj(cs, cur_c)
                program.append('proj_layer')
                args += [xs.reshape(n, cs, hw), wp, lw, lb]
                specs += [_act_spec(cs, t_hw), _full_spec(wp.shape),
                          _full_spec(lw.shape), _full_spec(lb.shape)]
            cur_c = cout

        # Trailing skip (no layer after it) -- absorbed into the same kernel.
        xs = skips[4]
        if self.skip_type == 'none' or xs is None:
            program.append('end_none')
        elif self.skip_type == 'cat':
            cs = xs.shape[1]
            program.append('end_cat')
            args += [xs.reshape(n, cs, hw)]
            specs += [_act_spec(cs, t_hw)]
            cur_c = cur_c + cs
        elif self.skip_type == 'sum':
            cs = xs.shape[1]
            assert cs >= cur_c, (cs, cur_c)
            program.append('end_sum')
            args += [xs.reshape(n, cs, hw)]
            specs += [_act_spec(cs, t_hw)]
        elif self.skip_type == 'proj':
            cs = xs.shape[1]
            wp = self._get_proj(cs, cur_c)
            program.append('end_proj')
            args += [xs.reshape(n, cs, hw), wp]
            specs += [_act_spec(cs, t_hw), _full_spec(wp.shape)]

        kernel = _build_fused_kernel(tuple(program))
        out = pl.pallas_call(
            kernel,
            out_shape=jax.ShapeDtypeStruct((n, cur_c, hw), x.dtype),
            grid_spec=pltpu.PrefetchScalarGridSpec(
                num_scalar_prefetch=0,
                grid=(n, pl.cdiv(hw, t_hw)),
                in_specs=specs,
                out_specs=pl.BlockSpec((None, cur_c, t_hw),
                                       lambda ni, ji: (ni, 0, ji)),
            ),
            compiler_params=pltpu.CompilerParams(
                dimension_semantics=("parallel", "parallel")),
        )(*args)
        return out.reshape(n, cur_c, h, w)

    def __call__(self, *args, **kwargs):
        return self.forward(*args, **kwargs)


# -----------------------------------------------------------------------------
# Pure-JAX f32 reference (for correctness check; same stand-in weights)
# -----------------------------------------------------------------------------
def _reference_forward(dec, x, skips):
    def conv1x1(wt, xv):
        return jnp.einsum('oc,nchw->nohw', wt.astype(jnp.float32),
                          xv.astype(jnp.float32))

    def do_skip(xv, xs):
        if dec.skip_type == 'none' or xs is None:
            return xv
        if dec.skip_type == 'cat':
            return jnp.concatenate([xv, xs.astype(jnp.float32)], axis=1)
        if dec.skip_type == 'sum':
            return xv + xs[:, :xv.shape[1]].astype(jnp.float32)
        if dec.skip_type == 'proj':
            wp = dec.proj_layers[(xs.shape[1], xv.shape[1])]
            return xv + conv1x1(wp, xs)
        raise ValueError(dec.skip_type)

    xv = x.astype(jnp.float32)
    for i in range(4):
        xv = do_skip(xv, skips[i])
        lw, lb = dec.layers[i]
        xv = jnp.maximum(conv1x1(lw, xv) + lb.reshape(1, -1, 1, 1), 0.0)
    xv = do_skip(xv, skips[4])
    return xv


# -----------------------------------------------------------------------------
# Example run
# -----------------------------------------------------------------------------
if __name__ == "__main__":
    key = jax.random.PRNGKey(0)
    k_param, k_x, k1, k2, k3, k4, k5 = jax.random.split(key, 7)

    N, H, W = 2, 16, 16
    # channel plan: 32 -> 16 -> 8 -> 8 -> 4
    layer_channels = [(32, 16), (16, 8), (8, 8), (8, 4)]
    skip_channels = [24, 16, 12, 8, 6]

    dec = Decoder(skip_type='proj', additional_input_ch=0,
                  layer_channels=layer_channels, key=k_param,
                  skip_channels=skip_channels)

    x = jax.random.normal(k_x, (N, 32, H, W), jnp.float32)
    x1 = jax.random.normal(k1, (N, 24, H, W), jnp.float32)
    x2 = jax.random.normal(k2, (N, 16, H, W), jnp.float32)
    x3 = jax.random.normal(k3, (N, 12, H, W), jnp.float32)
    x4 = jax.random.normal(k4, (N, 8, H, W), jnp.float32)
    x5 = jax.random.normal(k5, (N, 6, H, W), jnp.float32)

    out = dec(x, x1, x2, x3, x4, x5)
    jax.block_until_ready(out)
    assert out.shape == (N, 4, H, W), out.shape

    # Loose tolerance: kernel uses bf16 MXU inputs with f32 accumulation.
    ref = _reference_forward(dec, x, [x1, x2, x3, x4, x5])
    assert jnp.allclose(out, ref, atol=0.1, rtol=0.1), \
        float(jnp.max(jnp.abs(out - ref)))
    print("KERNEL_OK")
</pallas_src>

<mosaic_0001>
module attributes {stable_mosaic.version = 11 : i64} {
  func.func @kernel(%arg0: i32, %arg1: i32, %arg2: memref<1x32x256xf32, #tpu.memory_space<vmem>>, %arg3: memref<1x24x256xf32, #tpu.memory_space<vmem>>, %arg4: memref<32x24xbf16, #tpu.memory_space<vmem>>, %arg5: memref<16x32xbf16, #tpu.memory_space<vmem>>, %arg6: memref<16x1xf32, #tpu.memory_space<vmem>>, %arg7: memref<1x16x256xf32, #tpu.memory_space<vmem>>, %arg8: memref<16x16xbf16, #tpu.memory_space<vmem>>, %arg9: memref<8x16xbf16, #tpu.memory_space<vmem>>, %arg10: memref<8x1xf32, #tpu.memory_space<vmem>>, %arg11: memref<1x12x256xf32, #tpu.memory_space<vmem>>, %arg12: memref<8x12xbf16, #tpu.memory_space<vmem>>, %arg13: memref<8x8xbf16, #tpu.memory_space<vmem>>, %arg14: memref<8x1xf32, #tpu.memory_space<vmem>>, %arg15: memref<1x8x256xf32, #tpu.memory_space<vmem>>, %arg16: memref<8x8xbf16, #tpu.memory_space<vmem>>, %arg17: memref<4x8xbf16, #tpu.memory_space<vmem>>, %arg18: memref<4x1xf32, #tpu.memory_space<vmem>>, %arg19: memref<1x6x256xf32, #tpu.memory_space<vmem>>, %arg20: memref<4x6xbf16, #tpu.memory_space<vmem>>, %arg21: memref<1x4x256xf32, #tpu.memory_space<vmem>>) attributes {dimension_semantics = [#tpu.dimension_semantics<parallel>, #tpu.dimension_semantics<parallel>], iteration_bounds = array<i64: 2, 1>, scalar_prefetch = 0 : i64, scratch_operands = 0 : i64, tpu.core_type = #tpu.core_type<tc>, window_params = [{transform_indices = @transform_0, window_bounds = array<i64: 1, 32, 256>}, {transform_indices = @transform_1, window_bounds = array<i64: 1, 24, 256>}, {pipeline_mode = #tpu.pipeline_mode<synchronous>, transform_indices = @transform_2, window_bounds = array<i64: 32, 24>}, {pipeline_mode = #tpu.pipeline_mode<synchronous>, transform_indices = @transform_3, window_bounds = array<i64: 16, 32>}, {pipeline_mode = #tpu.pipeline_mode<synchronous>, transform_indices = @transform_4, window_bounds = array<i64: 16, 1>}, {transform_indices = @transform_5, window_bounds = array<i64: 1, 16, 256>}, {pipeline_mode = #tpu.pipeline_mode<synchronous>, transform_indices = @transform_6, window_bounds = array<i64: 16, 16>}, {pipeline_mode = #tpu.pipeline_mode<synchronous>, transform_indices = @transform_7, window_bounds = array<i64: 8, 16>}, {pipeline_mode = #tpu.pipeline_mode<synchronous>, transform_indices = @transform_8, window_bounds = array<i64: 8, 1>}, {transform_indices = @transform_9, window_bounds = array<i64: 1, 12, 256>}, {pipeline_mode = #tpu.pipeline_mode<synchronous>, transform_indices = @transform_10, window_bounds = array<i64: 8, 12>}, {pipeline_mode = #tpu.pipeline_mode<synchronous>, transform_indices = @transform_11, window_bounds = array<i64: 8, 8>}, {pipeline_mode = #tpu.pipeline_mode<synchronous>, transform_indices = @transform_12, window_bounds = array<i64: 8, 1>}, {transform_indices = @transform_13, window_bounds = array<i64: 1, 8, 256>}, {pipeline_mode = #tpu.pipeline_mode<synchronous>, transform_indices = @transform_14, window_bounds = array<i64: 8, 8>}, {pipeline_mode = #tpu.pipeline_mode<synchronous>, transform_indices = @transform_15, window_bounds = array<i64: 4, 8>}, {pipeline_mode = #tpu.pipeline_mode<synchronous>, transform_indices = @transform_16, window_bounds = array<i64: 4, 1>}, {transform_indices = @transform_17, window_bounds = array<i64: 1, 6, 256>}, {pipeline_mode = #tpu.pipeline_mode<synchronous>, transform_indices = @transform_18, window_bounds = array<i64: 4, 6>}, {transform_indices = @transform_19, window_bounds = array<i64: 1, 4, 256>}]} {
    %c0 = arith.constant 0 : index
    %c0_0 = arith.constant 0 : index
    %c0_1 = arith.constant 0 : index
    %0 = vector.load %arg2[%c0, %c0_0, %c0_1] : memref<1x32x256xf32, #tpu.memory_space<vmem>>, vector<1x32x256xf32>
    %1 = vector.shape_cast %0 : vector<1x32x256xf32> to vector<32x256xf32>
    %c0_2 = arith.constant 0 : index
    %c0_3 = arith.constant 0 : index
    %c0_4 = arith.constant 0 : index
    %2 = vector.load %arg3[%c0_2, %c0_3, %c0_4] : memref<1x24x256xf32, #tpu.memory_space<vmem>>, vector<1x24x256xf32>
    %3 = vector.shape_cast %2 : vector<1x24x256xf32> to vector<24x256xf32>
    %c0_5 = arith.constant 0 : index
    %c0_6 = arith.constant 0 : index
    %4 = vector.load %arg4[%c0_5, %c0_6] : memref<32x24xbf16, #tpu.memory_space<vmem>>, vector<32x24xbf16>
    %c0_7 = arith.constant 0 : index
    %c0_8 = arith.constant 0 : index
    %5 = vector.load %arg5[%c0_7, %c0_8] : memref<16x32xbf16, #tpu.memory_space<vmem>>, vector<16x32xbf16>
    %c0_9 = arith.constant 0 : index
    %c0_10 = arith.constant 0 : index
    %6 = vector.load %arg6[%c0_9, %c0_10] : memref<16x1xf32, #tpu.memory_space<vmem>>, vector<16x1xf32>
    %7 = arith.truncf %3 : vector<24x256xf32> to vector<24x256xbf16>
    %cst = arith.constant dense<0.000000e+00> : vector<32x256xf32>
    %8 = tpu.matmul %4, %7, %cst {dimension_numbers = #tpu.dot_dimension_numbers<[1], [0], [0], [1], [0, 0, 1, 1], [], []>} : vector<32x24xbf16>, vector<24x256xbf16>, vector<32x256xf32> -> vector<32x256xf32>
    %9 = arith.addf %1, %8 : vector<32x256xf32>
    %10 = arith.truncf %9 : vector<32x256xf32> to vector<32x256xbf16>
    %cst_11 = arith.constant dense<0.000000e+00> : vector<16x256xf32>
    %11 = tpu.matmul %5, %10, %cst_11 {dimension_numbers = #tpu.dot_dimension_numbers<[1], [0], [0], [1], [0, 0, 1, 1], [], []>} : vector<16x32xbf16>, vector<32x256xbf16>, vector<16x256xf32> -> vector<16x256xf32>
    %12 = vector.broadcast %6 : vector<16x1xf32> to vector<16x256xf32>
    %13 = arith.addf %11, %12 : vector<16x256xf32>
    %cst_12 = arith.constant 0.000000e+00 : f32
    %14 = vector.broadcast %cst_12 : f32 to vector<16x256xf32>
    %15 = arith.maximumf %13, %14 : vector<16x256xf32>
    %c0_13 = arith.constant 0 : index
    %c0_14 = arith.constant 0 : index
    %c0_15 = arith.constant 0 : index
    %16 = vector.load %arg7[%c0_13, %c0_14, %c0_15] : memref<1x16x256xf32, #tpu.memory_space<vmem>>, vector<1x16x256xf32>
    %17 = vector.shape_cast %16 : vector<1x16x256xf32> to vector<16x256xf32>
    %c0_16 = arith.constant 0 : index
    %c0_17 = arith.constant 0 : index
    %18 = vector.load %arg8[%c0_16, %c0_17] : memref<16x16xbf16, #tpu.memory_space<vmem>>, vector<16x16xbf16>
    %c0_18 = arith.constant 0 : index
    %c0_19 = arith.constant 0 : index
    %19 = vector.load %arg9[%c0_18, %c0_19] : memref<8x16xbf16, #tpu.memory_space<vmem>>, vector<8x16xbf16>
    %c0_20 = arith.constant 0 : index
    %c0_21 = arith.constant 0 : index
    %20 = vector.load %arg10[%c0_20, %c0_21] : memref<8x1xf32, #tpu.memory_space<vmem>>, vector<8x1xf32>
    %21 = arith.truncf %17 : vector<16x256xf32> to vector<16x256xbf16>
    %cst_22 = arith.constant dense<0.000000e+00> : vector<16x256xf32>
    %22 = tpu.matmul %18, %21, %cst_22 {dimension_numbers = #tpu.dot_dimension_numbers<[1], [0], [0], [1], [0, 0, 1, 1], [], []>} : vector<16x16xbf16>, vector<16x256xbf16>, vector<16x256xf32> -> vector<16x256xf32>
    %23 = arith.addf %15, %22 : vector<16x256xf32>
    %24 = arith.truncf %23 : vector<16x256xf32> to vector<16x256xbf16>
    %cst_23 = arith.constant dense<0.000000e+00> : vector<8x256xf32>
    %25 = tpu.matmul %19, %24, %cst_23 {dimension_numbers = #tpu.dot_dimension_numbers<[1], [0], [0], [1], [0, 0, 1, 1], [], []>} : vector<8x16xbf16>, vector<16x256xbf16>, vector<8x256xf32> -> vector<8x256xf32>
    %26 = vector.broadcast %20 : vector<8x1xf32> to vector<8x256xf32>
    %27 = arith.addf %25, %26 : vector<8x256xf32>
    %cst_24 = arith.constant 0.000000e+00 : f32
    %28 = vector.broadcast %cst_24 : f32 to vector<8x256xf32>
    %29 = arith.maximumf %27, %28 : vector<8x256xf32>
    %c0_25 = arith.constant 0 : index
    %c0_26 = arith.constant 0 : index
    %c0_27 = arith.constant 0 : index
    %30 = vector.load %arg11[%c0_25, %c0_26, %c0_27] : memref<1x12x256xf32, #tpu.memory_space<vmem>>, vector<1x12x256xf32>
    %31 = vector.shape_cast %30 : vector<1x12x256xf32> to vector<12x256xf32>
    %c0_28 = arith.constant 0 : index
    %c0_29 = arith.constant 0 : index
    %32 = vector.load %arg12[%c0_28, %c0_29] : memref<8x12xbf16, #tpu.memory_space<vmem>>, vector<8x12xbf16>
    %c0_30 = arith.constant 0 : index
    %c0_31 = arith.constant 0 : index
    %33 = vector.load %arg13[%c0_30, %c0_31] : memref<8x8xbf16, #tpu.memory_space<vmem>>, vector<8x8xbf16>
    %c0_32 = arith.constant 0 : index
    %c0_33 = arith.constant 0 : index
    %34 = vector.load %arg14[%c0_32, %c0_33] : memref<8x1xf32, #tpu.memory_space<vmem>>, vector<8x1xf32>
    %35 = arith.truncf %31 : vector<12x256xf32> to vector<12x256xbf16>
    %cst_34 = arith.constant dense<0.000000e+00> : vector<8x256xf32>
    %36 = tpu.matmul %32, %35, %cst_34 {dimension_numbers = #tpu.dot_dimension_numbers<[1], [0], [0], [1], [0, 0, 1, 1], [], []>} : vector<8x12xbf16>, vector<12x256xbf16>, vector<8x256xf32> -> vector<8x256xf32>
    %37 = arith.addf %29, %36 : vector<8x256xf32>
    %38 = arith.truncf %37 : vector<8x256xf32> to vector<8x256xbf16>
    %cst_35 = arith.constant dense<0.000000e+00> : vector<8x256xf32>
    %39 = tpu.matmul %33, %38, %cst_35 {dimension_numbers = #tpu.dot_dimension_numbers<[1], [0], [0], [1], [0, 0, 1, 1], [], []>} : vector<8x8xbf16>, vector<8x256xbf16>, vector<8x256xf32> -> vector<8x256xf32>
    %40 = vector.broadcast %34 : vector<8x1xf32> to vector<8x256xf32>
    %41 = arith.addf %39, %40 : vector<8x256xf32>
    %cst_36 = arith.constant 0.000000e+00 : f32
    %42 = vector.broadcast %cst_36 : f32 to vector<8x256xf32>
    %43 = arith.maximumf %41, %42 : vector<8x256xf32>
    %c0_37 = arith.constant 0 : index
    %c0_38 = arith.constant 0 : index
    %c0_39 = arith.constant 0 : index
    %44 = vector.load %arg15[%c0_37, %c0_38, %c0_39] : memref<1x8x256xf32, #tpu.memory_space<vmem>>, vector<1x8x256xf32>
    %45 = vector.shape_cast %44 : vector<1x8x256xf32> to vector<8x256xf32>
    %c0_40 = arith.constant 0 : index
    %c0_41 = arith.constant 0 : index
    %46 = vector.load %arg16[%c0_40, %c0_41] : memref<8x8xbf16, #tpu.memory_space<vmem>>, vector<8x8xbf16>
    %c0_42 = arith.constant 0 : index
    %c0_43 = arith.constant 0 : index
    %47 = vector.load %arg17[%c0_42, %c0_43] : memref<4x8xbf16, #tpu.memory_space<vmem>>, vector<4x8xbf16>
    %c0_44 = arith.constant 0 : index
    %c0_45 = arith.constant 0 : index
    %48 = vector.load %arg18[%c0_44, %c0_45] : memref<4x1xf32, #tpu.memory_space<vmem>>, vector<4x1xf32>
    %49 = arith.truncf %45 : vector<8x256xf32> to vector<8x256xbf16>
    %cst_46 = arith.constant dense<0.000000e+00> : vector<8x256xf32>
    %50 = tpu.matmul %46, %49, %cst_46 {dimension_numbers = #tpu.dot_dimension_numbers<[1], [0], [0], [1], [0, 0, 1, 1], [], []>} : vector<8x8xbf16>, vector<8x256xbf16>, vector<8x256xf32> -> vector<8x256xf32>
    %51 = arith.addf %43, %50 : vector<8x256xf32>
    %52 = arith.truncf %51 : vector<8x256xf32> to vector<8x256xbf16>
    %cst_47 = arith.constant dense<0.000000e+00> : vector<4x256xf32>
    %53 = tpu.matmul %47, %52, %cst_47 {dimension_numbers = #tpu.dot_dimension_numbers<[1], [0], [0], [1], [0, 0, 1, 1], [], []>} : vector<4x8xbf16>, vector<8x256xbf16>, vector<4x256xf32> -> vector<4x256xf32>
    %54 = vector.broadcast %48 : vector<4x1xf32> to vector<4x256xf32>
    %55 = arith.addf %53, %54 : vector<4x256xf32>
    %cst_48 = arith.constant 0.000000e+00 : f32
    %56 = vector.broadcast %cst_48 : f32 to vector<4x256xf32>
    %57 = arith.maximumf %55, %56 : vector<4x256xf32>
    %c0_49 = arith.constant 0 : index
    %c0_50 = arith.constant 0 : index
    %c0_51 = arith.constant 0 : index
    %58 = vector.load %arg19[%c0_49, %c0_50, %c0_51] : memref<1x6x256xf32, #tpu.memory_space<vmem>>, vector<1x6x256xf32>
    %59 = vector.shape_cast %58 : vector<1x6x256xf32> to vector<6x256xf32>
    %c0_52 = arith.constant 0 : index
    %c0_53 = arith.constant 0 : index
    %60 = vector.load %arg20[%c0_52, %c0_53] : memref<4x6xbf16, #tpu.memory_space<vmem>>, vector<4x6xbf16>
    %61 = arith.truncf %59 : vector<6x256xf32> to vector<6x256xbf16>
    %cst_54 = arith.constant dense<0.000000e+00> : vector<4x256xf32>
    %62 = tpu.matmul %60, %61, %cst_54 {dimension_numbers = #tpu.dot_dimension_numbers<[1], [0], [0], [1], [0, 0, 1, 1], [], []>} : vector<4x6xbf16>, vector<6x256xbf16>, vector<4x256xf32> -> vector<4x256xf32>
    %63 = arith.addf %57, %62 : vector<4x256xf32>
    %c0_55 = arith.constant 0 : index
    %c0_56 = arith.constant 0 : index
    %c0_57 = arith.constant 0 : index
    %64 = vector.load %arg21[%c0_55, %c0_56, %c0_57] : memref<1x4x256xf32, #tpu.memory_space<vmem>>, vector<1x4x256xf32>
    %65 = vector.shape_cast %64 : vector<1x4x256xf32> to vector<4x256xf32>
    %66 = vector.shape_cast %63 : vector<4x256xf32> to vector<1x4x256xf32>
    tpu.vector_store %arg21[%c0_55, %c0_56, %c0_57], %66 {strides = array<i32>} : memref<1x4x256xf32, #tpu.memory_space<vmem>>, vector<1x4x256xf32>,
    return
  }
  func.func @transform_0(%arg0: i32, %arg1: i32) -> (i32, i32, i32) {
    %c0_i32 = arith.constant 0 : i32
    %c0_i32_0 = arith.constant 0 : i32
    return %arg0, %c0_i32, %arg1 : i32, i32, i32
  }
  func.func @transform_1(%arg0: i32, %arg1: i32) -> (i32, i32, i32) {
    %c0_i32 = arith.constant 0 : i32
    %c0_i32_0 = arith.constant 0 : i32
    return %arg0, %c0_i32, %arg1 : i32, i32, i32
  }
  func.func @transform_2(%arg0: i32, %arg1: i32) -> (i32, i32) {
    %c0_i32 = arith.constant 0 : i32
    %c0_i32_0 = arith.constant 0 : i32
    %c0_i32_1 = arith.constant 0 : i32
    return %c0_i32, %c0_i32_0 : i32, i32
  }
  func.func @transform_3(%arg0: i32, %arg1: i32) -> (i32, i32) {
    %c0_i32 = arith.constant 0 : i32
    %c0_i32_0 = arith.constant 0 : i32
    %c0_i32_1 = arith.constant 0 : i32
    return %c0_i32, %c0_i32_0 : i32, i32
  }
  func.func @transform_4(%arg0: i32, %arg1: i32) -> (i32, i32) {
    %c0_i32 = arith.constant 0 : i32
    %c0_i32_0 = arith.constant 0 : i32
    %c0_i32_1 = arith.constant 0 : i32
    return %c0_i32, %c0_i32_0 : i32, i32
  }
  func.func @transform_5(%arg0: i32, %arg1: i32) -> (i32, i32, i32) {
    %c0_i32 = arith.constant 0 : i32
    %c0_i32_0 = arith.constant 0 : i32
    return %arg0, %c0_i32, %arg1 : i32, i32, i32
  }
  func.func @transform_6(%arg0: i32, %arg1: i32) -> (i32, i32) {
    %c0_i32 = arith.constant 0 : i32
    %c0_i32_0 = arith.constant 0 : i32
    %c0_i32_1 = arith.constant 0 : i32
    return %c0_i32, %c0_i32_0 : i32, i32
  }
  func.func @transform_7(%arg0: i32, %arg1: i32) -> (i32, i32) {
    %c0_i32 = arith.constant 0 : i32
    %c0_i32_0 = arith.constant 0 : i32
    %c0_i32_1 = arith.constant 0 : i32
    return %c0_i32, %c0_i32_0 : i32, i32
  }
  func.func @transform_8(%arg0: i32, %arg1: i32) -> (i32, i32) {
    %c0_i32 = arith.constant 0 : i32
    %c0_i32_0 = arith.constant 0 : i32
    %c0_i32_1 = arith.constant 0 : i32
    return %c0_i32, %c0_i32_0 : i32, i32
  }
  func.func @transform_9(%arg0: i32, %arg1: i32) -> (i32, i32, i32) {
    %c0_i32 = arith.constant 0 : i32
    %c0_i32_0 = arith.constant 0 : i32
    return %arg0, %c0_i32, %arg1 : i32, i32, i32
  }
  func.func @transform_10(%arg0: i32, %arg1: i32) -> (i32, i32) {
    %c0_i32 = arith.constant 0 : i32
    %c0_i32_0 = arith.constant 0 : i32
    %c0_i32_1 = arith.constant 0 : i32
    return %c0_i32, %c0_i32_0 : i32, i32
  }
  func.func @transform_11(%arg0: i32, %arg1: i32) -> (i32, i32) {
    %c0_i32 = arith.constant 0 : i32
    %c0_i32_0 = arith.constant 0 : i32
    %c0_i32_1 = arith.constant 0 : i32
    return %c0_i32, %c0_i32_0 : i32, i32
  }
  func.func @transform_12(%arg0: i32, %arg1: i32) -> (i32, i32) {
    %c0_i32 = arith.constant 0 : i32
    %c0_i32_0 = arith.constant 0 : i32
    %c0_i32_1 = arith.constant 0 : i32
    return %c0_i32, %c0_i32_0 : i32, i32
  }
  func.func @transform_13(%arg0: i32, %arg1: i32) -> (i32, i32, i32) {
    %c0_i32 = arith.constant 0 : i32
    %c0_i32_0 = arith.constant 0 : i32
    return %arg0, %c0_i32, %arg1 : i32, i32, i32
  }
  func.func @transform_14(%arg0: i32, %arg1: i32) -> (i32, i32) {
    %c0_i32 = arith.constant 0 : i32
    %c0_i32_0 = arith.constant 0 : i32
    %c0_i32_1 = arith.constant 0 : i32
    return %c0_i32, %c0_i32_0 : i32, i32
  }
  func.func @transform_15(%arg0: i32, %arg1: i32) -> (i32, i32) {
    %c0_i32 = arith.constant 0 : i32
    %c0_i32_0 = arith.constant 0 : i32
    %c0_i32_1 = arith.constant 0 : i32
    return %c0_i32, %c0_i32_0 : i32, i32
  }
  func.func @transform_16(%arg0: i32, %arg1: i32) -> (i32, i32) {
    %c0_i32 = arith.constant 0 : i32
    %c0_i32_0 = arith.constant 0 : i32
    %c0_i32_1 = arith.constant 0 : i32
    return %c0_i32, %c0_i32_0 : i32, i32
  }
  func.func @transform_17(%arg0: i32, %arg1: i32) -> (i32, i32, i32) {
    %c0_i32 = arith.constant 0 : i32
    %c0_i32_0 = arith.constant 0 : i32
    return %arg0, %c0_i32, %arg1 : i32, i32, i32
  }
  func.func @transform_18(%arg0: i32, %arg1: i32) -> (i32, i32) {
    %c0_i32 = arith.constant 0 : i32
    %c0_i32_0 = arith.constant 0 : i32
    %c0_i32_1 = arith.constant 0 : i32
    return %c0_i32, %c0_i32_0 : i32, i32
  }
  func.func @transform_19(%arg0: i32, %arg1: i32) -> (i32, i32, i32) {
    %c0_i32 = arith.constant 0 : i32
    %c0_i32_0 = arith.constant 0 : i32
    return %arg0, %c0_i32, %arg1 : i32, i32, i32
  }
}

</mosaic_0001>

<llo_original>
// kernel: tpu_custom_call.1
$region0: #{tpu_custom_call.1}
  #allocation0 [shape = 'u32[]', space=smem, size = 0x4, offset = 0x4, fixed_abs, tag = 'smem constant byte address 0x4 - core index']
  #allocation1 [shape = 'u32[144,128]{1,0:T(1,128)}', space=vmem, size = 0x12000, scoped, tag = 'internal scratch']
  %s0 = inlined_call_operand.vmem [shape: f32[2,32,256], index: 0, kind: input, shape index: {}]
  %s1 = inlined_call_operand.vmem [shape: f32[2,24,256], index: 1, kind: input, shape index: {}]
  %s2 = inlined_call_operand.vmem [shape: bf16[32,24], index: 2, kind: input, shape index: {}]
  %s3 = inlined_call_operand.hbm [shape: bf16[16,32], index: 3, kind: input, shape index: {}]
  %s4 = inlined_call_operand.vmem [shape: f32[16,1], index: 4, kind: input, shape index: {}]
  %s5 = inlined_call_operand.hbm [shape: f32[2,16,256], index: 5, kind: input, shape index: {}]
  %s6 = inlined_call_operand.hbm [shape: bf16[16,16], index: 6, kind: input, shape index: {}]
  %s7 = inlined_call_operand.hbm [shape: bf16[8,16], index: 7, kind: input, shape index: {}]
  %s8 = inlined_call_operand.vmem [shape: f32[8,1], index: 8, kind: input, shape index: {}]
  %s9 = inlined_call_operand.vmem [shape: f32[2,12,256], index: 9, kind: input, shape index: {}]
  %s10 = inlined_call_operand.hbm [shape: bf16[8,12], index: 10, kind: input, shape index: {}]
  %s11 = inlined_call_operand.hbm [shape: bf16[8,8], index: 11, kind: input, shape index: {}]
  %s12 = inlined_call_operand.vmem [shape: f32[8,1], index: 12, kind: input, shape index: {}]
  %s13 = inlined_call_operand.vmem [shape: f32[2,8,256], index: 13, kind: input, shape index: {}]
  %s14 = inlined_call_operand.vmem [shape: bf16[8,8], index: 14, kind: input, shape index: {}]
  %s15 = inlined_call_operand.vmem [shape: bf16[4,8], index: 15, kind: input, shape index: {}]
  %s16 = inlined_call_operand.vmem [shape: f32[4,1], index: 16, kind: input, shape index: {}]
  %s17 = inlined_call_operand.vmem [shape: f32[2,6,256], index: 17, kind: input, shape index: {}]
  %s18 = inlined_call_operand.vmem [shape: bf16[4,6], index: 18, kind: input, shape index: {}]
  %s19 = inlined_call_operand.hbm [shape: f32[2,4,256], index: 19, kind: output, shape index: {}]
  %s20 = sld [smem:[#allocation0]]
  $region133: #{tpu_custom_call.1} parent=0
    _
  %s22 = ssub.s32 1, %s20
  %s23 = scalar_select 0, %s22, %s20
  $region1: #{tpu_custom_call.1} parent=0
    #allocation2 [shape = 'u8[4096]{0}', space=vmem, size = 0x1000, scoped, tag = 'input window, operand 3, single buffered']
    #allocation3 [shape = 's32[2]{0}', space=sflag, size = 0x8, scoped, tag = 'scoped memory for tpu_custom_call.1']
    #allocation4 [shape = 's32[2]{0}', space=sflag, size = 0x8, scoped, tag = 'scoped memory for tpu_custom_call.1']
    #allocation5 [shape = 'u8[32768]{0}', space=vmem, size = 0x8000, scoped, tag = 'input window, operand 5']
    #allocation6 [shape = 's32[2]{0}', space=sflag, size = 0x8, scoped, tag = 'scoped memory for tpu_custom_call.1']
    #allocation7 [shape = 'u8[4096]{0}', space=vmem, size = 0x1000, scoped, tag = 'input window, operand 6, single buffered']
    #allocation8 [shape = 'u8[2048]{0}', space=vmem, size = 0x800, scoped, tag = 'input window, operand 7, single buffered']
    #allocation9 [shape = 's32[1]{0}', space=sflag, size = 0x4, scoped, tag = 'scoped memory for tpu_custom_call.1']
    #allocation10 [shape = 'u8[2048]{0}', space=vmem, size = 0x800, scoped, tag = 'input window, operand 10, single buffered']
    #allocation11 [shape = 'u8[2048]{0}', space=vmem, size = 0x800, scoped, tag = 'input window, operand 11, single buffered']
    #allocation12 [shape = 's32[1]{0}', space=sflag, size = 0x4, scoped, tag = 'scoped memory for tpu_custom_call.1']
    #allocation13 [shape = 'u8[8192]{0}', space=vmem, size = 0x2000, scoped, tag = 'output window, operand 0']
    %24 = vsyncpa [#allocation3], 0
    %25 = vsyncpa [#allocation6], 0
    %s26 = scalar_lea.sflag [#allocation6], 1
    %27 = vsyncpa %s26, 0
    %28 = vsyncpa [#allocation9], 0
    %29 = vsyncpa [#allocation12], 0
    %30 = vsyncpa [#allocation4], 0
    %s31 = scalar_lea.sflag [#allocation4], 1
    %32 = vsyncpa %s31, 0
    loop: start=0, step=1, limit=4
    $region2: #{tpu_custom_call.1} parent=1 // loop_pre_header
      _
    $region3: #{tpu_custom_call.1} parent=1 // loop_header
      %s34 = sphi 0, %s38
      %p35 = scmp.ge.s32.totalorder %s34, 4
      %s41 = sphi 0, %s53
      %s42 = sphi 0, %s49
      %s43 = sphi 0, %s41
      %s44 = sphi 0, %s42
      %s45 = sphi 0, %s43
      %s46 = sphi 0, %s44
      %s58 = sphi 0, %s60
      %s61 = sphi 0, %s58
      %s62 = sphi 0, %s61
      %s78 = sphi 0, %s62
      %s86 = sphi 0, %s88
      %s89 = sphi 0, %s86
      %s90 = sphi 0, %s89
      %s106 = sphi 0, %s90
      %s110 = sphi 0, %s110
      %s112 = sphi 0, %s110
      %s113 = sphi 0, %s112
      %s127 = sphi 0, %s113
      %s131 = sphi 0, %s131
      %s133 = sphi 0, %s131
      %s134 = sphi 0, %s133
      %s148 = sphi 0, %s134
      %s152 = sphi 0, %s152
      %s154 = sphi 0, %s152
      %s155 = sphi 0, %s154
      %s169 = sphi 0, %s155
      %s177 = sphi 0, %s179
      %s180 = sphi 0, %s177
      %s181 = sphi 0, %s180
      %s197 = sphi 0, %s181
      %s201 = sphi 0, %s201
      %s203 = sphi 0, %s201
      %s204 = sphi 0, %s203
      %s218 = sphi 0, %s204
      %s222 = sphi 0, %s222
      %s224 = sphi 0, %s222
      %s225 = sphi 0, %s224
      %s239 = sphi 0, %s225
      %s243 = sphi 0, %s243
      %s245 = sphi 0, %s243
      %s246 = sphi 0, %s245
      %s260 = sphi 0, %s246
      %s268 = sphi 0, %s270
      %s271 = sphi 0, %s268
      %s272 = sphi 0, %s271
      %s288 = sphi 0, %s272
      %s292 = sphi 0, %s292
      %s294 = sphi 0, %s292
      %s295 = sphi 0, %s294
      %s309 = sphi 0, %s295
      %s313 = sphi 0, %s313
      %s315 = sphi 0, %s313
      %s316 = sphi 0, %s315
      %s330 = sphi 0, %s316
      %s334 = sphi 0, %s334
      %s336 = sphi 0, %s334
      %s337 = sphi 0, %s336
      %s351 = sphi 0, %s337
      %s359 = sphi 0, %s361
      %s362 = sphi 0, %s359
      %s363 = sphi 0, %s362
      %s379 = sphi 0, %s363
      %s383 = sphi 0, %s383
      %s385 = sphi 0, %s383
      %s386 = sphi 0, %s385
      %s400 = sphi 0, %s386
      %s404 = sphi 0, %s404
      %s406 = sphi 0, %s404
      %s407 = sphi 0, %s406
      %s421 = sphi 0, %s407
      %s425 = sphi 0, %s425
      %s427 = sphi 0, %s425
      %s428 = sphi 0, %s427
      %s442 = sphi 0, %s428
      %s450 = sphi 0, %s452
      %s453 = sphi 0, %s450
      %s454 = sphi 0, %s453
      %s470 = sphi 0, %s454
      %s474 = sphi 0, %s474
      %s476 = sphi 0, %s474
      %s477 = sphi 0, %s476
      %s491 = sphi 0, %s477
      %s499 = sphi 0, %s501
      %s502 = sphi 0, %s499
      %s503 = sphi 0, %s502
      %s519 = sphi 0, %s503
    $region4: #{tpu_custom_call.1} parent=1 // loop_header_branch
      %37 = sbr.rel (%p35) target = $region8
    $region5: #{tpu_custom_call.1} parent=1 // loop_body
      %s39 = ssub.s32 %s34, 1
      %s40 = ssub.s32 %s34, 2
      %s47 = sadd.s32 1, %s42
      %p48 = scmp.ge.s32.totalorder %s47, 1
      %s49 = scalar_select %p48, 0, %s47
      %s50 = sadd.s32 1, %s41
      %s51 = scalar_select %p48, %s50, %s41
      %p52 = scmp.ge.s32.totalorder %s51, 2
      %s53 = scalar_select %p52, 0, %s51
      %s54 = ssub.s32 %s41, %s53
      %s55 = ssub.s32 %s42, %s49
      %s56 = sor.u32 %s54, %s55
      %p57 = scmp.eq.s32.totalorder %s56, 0
      %s59 = sadd.s32 %s58, 1
      %s60 = scalar_select %p57, %s58, %s59
      %p63 = pneg %p57
      %p64 = scmp.eq.s32.totalorder %s34, 1
      %p65 = por %p63, %p64
      %p66 = scmp.ne.s32.totalorder %s58, %s61
      %p67 = scmp.eq.s32.totalorder %s34, 0
      %p68 = por %p66, %p67
      %p69 = scmp.ne.s32.totalorder %s58, %s61
      %p70 = scmp.eq.s32.totalorder %s39, 1
      %p71 = por %p69, %p70
      %p72 = scmp.ne.s32.totalorder %s61, %s62
      %p73 = scmp.eq.s32.totalorder %s39, 0
      %p74 = por %p72, %p73
      %p75 = scmp.ne.s32.totalorder %s61, %s62
      %p76 = scmp.eq.s32.totalorder %s40, 1
      %p77 = por %p75, %p76
      %p79 = scmp.ne.s32.totalorder %s62, %s78
      %p80 = scmp.eq.s32.totalorder %s40, 0
      %p81 = por %p79, %p80
      %s82 = ssub.s32 %s41, %s53
      %s83 = ssub.s32 %s42, %s49
      %s84 = sor.u32 %s82, %s83
      %p85 = scmp.eq.s32.totalorder %s84, 0
      %s87 = sadd.s32 %s86, 1
      %s88 = scalar_select %p85, %s86, %s87
      %p91 = pneg %p85
      %p92 = scmp.eq.s32.totalorder %s34, 1
      %p93 = por %p91, %p92
      %p94 = scmp.ne.s32.totalorder %s86, %s89
      %p95 = scmp.eq.s32.totalorder %s34, 0
      %p96 = por %p94, %p95
      %p97 = scmp.ne.s32.totalorder %s86, %s89
      %p98 = scmp.eq.s32.totalorder %s39, 1
      %p99 = por %p97, %p98
      %p100 = scmp.ne.s32.totalorder %s89, %s90
      %p101 = scmp.eq.s32.totalorder %s39, 0
      %p102 = por %p100, %p101
      %p103 = scmp.ne.s32.totalorder %s89, %s90
      %p104 = scmp.eq.s32.totalorder %s40, 1
      %p105 = por %p103, %p104
      %p107 = scmp.ne.s32.totalorder %s90, %s106
      %p108 = scmp.eq.s32.totalorder %s40, 0
      %p109 = por %p107, %p108
      %s111 = sadd.s32 %s110, 1
      %p114 = scmp.eq.s32.totalorder %s34, 1
      %p115 = scmp.ne.s32.totalorder %s110, %s112
      %p116 = scmp.eq.s32.totalorder %s34, 0
      %p117 = por %p115, %p116
      %p118 = scmp.ne.s32.totalorder %s110, %s112
      %p119 = scmp.eq.s32.totalorder %s39, 1
      %p120 = por %p118, %p119
      %p121 = scmp.ne.s32.totalorder %s112, %s113
      %p122 = scmp.eq.s32.totalorder %s39, 0
      %p123 = por %p121, %p122
      %p124 = scmp.ne.s32.totalorder %s112, %s113
      %p125 = scmp.eq.s32.totalorder %s40, 1
      %p126 = por %p124, %p125
      %p128 = scmp.ne.s32.totalorder %s113, %s127
      %p129 = scmp.eq.s32.totalorder %s40, 0
      %p130 = por %p128, %p129
      %s132 = sadd.s32 %s131, 1
      %p135 = scmp.eq.s32.totalorder %s34, 1
      %p136 = scmp.ne.s32.totalorder %s131, %s133
      %p137 = scmp.eq.s32.totalorder %s34, 0
      %p138 = por %p136, %p137
      %p139 = scmp.ne.s32.totalorder %s131, %s133
      %p140 = scmp.eq.s32.totalorder %s39, 1
      %p141 = por %p139, %p140
      %p142 = scmp.ne.s32.totalorder %s133, %s134
      %p143 = scmp.eq.s32.totalorder %s39, 0
      %p144 = por %p142, %p143
      %p145 = scmp.ne.s32.totalorder %s133, %s134
      %p146 = scmp.eq.s32.totalorder %s40, 1
      %p147 = por %p145, %p146
      %p149 = scmp.ne.s32.totalorder %s134, %s148
      %p150 = scmp.eq.s32.totalorder %s40, 0
      %p151 = por %p149, %p150
      %s153 = sadd.s32 %s152, 1
      %p156 = scmp.eq.s32.totalorder %s34, 1
      %p157 = scmp.ne.s32.totalorder %s152, %s154
      %p158 = scmp.eq.s32.totalorder %s34, 0
      %p159 = por %p157, %p158
      %p160 = scmp.ne.s32.totalorder %s152, %s154
      %p161 = scmp.eq.s32.totalorder %s39, 1
      %p162 = por %p160, %p161
      %p163 = scmp.ne.s32.totalorder %s154, %s155
      %p164 = scmp.eq.s32.totalorder %s39, 0
      %p165 = por %p163, %p164
      %p166 = scmp.ne.s32.totalorder %s154, %s155
      %p167 = scmp.eq.s32.totalorder %s40, 1
      %p168 = por %p166, %p167
      %p170 = scmp.ne.s32.totalorder %s155, %s169
      %p171 = scmp.eq.s32.totalorder %s40, 0
      %p172 = por %p170, %p171
      %s173 = ssub.s32 %s41, %s53
      %s174 = ssub.s32 %s42, %s49
      %s175 = sor.u32 %s173, %s174
      %p176 = scmp.eq.s32.totalorder %s175, 0
      %s178 = sadd.s32 %s177, 1
      %s179 = scalar_select %p176, %s177, %s178
      %p182 = pneg %p176
      %p183 = scmp.eq.s32.totalorder %s34, 1
      %p184 = por %p182, %p183
      %p185 = scmp.ne.s32.totalorder %s177, %s180
      %p186 = scmp.eq.s32.totalorder %s34, 0
      %p187 = por %p185, %p186
      %p188 = scmp.ne.s32.totalorder %s177, %s180
      %p189 = scmp.eq.s32.totalorder %s39, 1
      %p190 = por %p188, %p189
      %p191 = scmp.ne.s32.totalorder %s180, %s181
      %p192 = scmp.eq.s32.totalorder %s39, 0
      %p193 = por %p191, %p192
      %p194 = scmp.ne.s32.totalorder %s180, %s181
      %p195 = scmp.eq.s32.totalorder %s40, 1
      %p196 = por %p194, %p195
      %p198 = scmp.ne.s32.totalorder %s181, %s197
      %p199 = scmp.eq.s32.totalorder %s40, 0
      %p200 = por %p198, %p199
      %s202 = sadd.s32 %s201, 1
      %p205 = scmp.eq.s32.totalorder %s34, 1
      %p206 = scmp.ne.s32.totalorder %s201, %s203
      %p207 = scmp.eq.s32.totalorder %s34, 0
      %p208 = por %p206, %p207
      %p209 = scmp.ne.s32.totalorder %s201, %s203
      %p210 = scmp.eq.s32.totalorder %s39, 1
      %p211 = por %p209, %p210
      %p212 = scmp.ne.s32.totalorder %s203, %s204
      %p213 = scmp.eq.s32.totalorder %s39, 0
      %p214 = por %p212, %p213
      %p215 = scmp.ne.s32.totalorder %s203, %s204
      %p216 = scmp.eq.s32.totalorder %s40, 1
      %p217 = por %p215, %p216
      %p219 = scmp.ne.s32.totalorder %s204, %s218
      %p220 = scmp.eq.s32.totalorder %s40, 0
      %p221 = por %p219, %p220
      %s223 = sadd.s32 %s222, 1
      %p226 = scmp.eq.s32.totalorder %s34, 1
      %p227 = scmp.ne.s32.totalorder %s222, %s224
      %p228 = scmp.eq.s32.totalorder %s34, 0
      %p229 = por %p227, %p228
      %p230 = scmp.ne.s32.totalorder %s222, %s224
      %p231 = scmp.eq.s32.totalorder %s39, 1
      %p232 = por %p230, %p231
      %p233 = scmp.ne.s32.totalorder %s224, %s225
      %p234 = scmp.eq.s32.totalorder %s39, 0
      %p235 = por %p233, %p234
      %p236 = scmp.ne.s32.totalorder %s224, %s225
      %p237 = scmp.eq.s32.totalorder %s40, 1
      %p238 = por %p236, %p237
      %p240 = scmp.ne.s32.totalorder %s225, %s239
      %p241 = scmp.eq.s32.totalorder %s40, 0
      %p242 = por %p240, %p241
      %s244 = sadd.s32 %s243, 1
      %p247 = scmp.eq.s32.totalorder %s34, 1
      %p248 = scmp.ne.s32.totalorder %s243, %s245
      %p249 = scmp.eq.s32.totalorder %s34, 0
      %p250 = por %p248, %p249
      %p251 = scmp.ne.s32.totalorder %s243, %s245
      %p252 = scmp.eq.s32.totalorder %s39, 1
      %p253 = por %p251, %p252
      %p254 = scmp.ne.s32.totalorder %s245, %s246
      %p255 = scmp.eq.s32.totalorder %s39, 0
      %p256 = por %p254, %p255
      %p257 = scmp.ne.s32.totalorder %s245, %s246
      %p258 = scmp.eq.s32.totalorder %s40, 1
      %p259 = por %p257, %p258
      %p261 = scmp.ne.s32.totalorder %s246, %s260
      %p262 = scmp.eq.s32.totalorder %s40, 0
      %p263 = por %p261, %p262
      %s264 = ssub.s32 %s41, %s53
      %s265 = ssub.s32 %s42, %s49
      %s266 = sor.u32 %s264, %s265
      %p267 = scmp.eq.s32.totalorder %s266, 0
      %s269 = sadd.s32 %s268, 1
      %s270 = scalar_select %p267, %s268, %s269
      %p273 = pneg %p267
      %p274 = scmp.eq.s32.totalorder %s34, 1
      %p275 = por %p273, %p274
      %p276 = scmp.ne.s32.totalorder %s268, %s271
      %p277 = scmp.eq.s32.totalorder %s34, 0
      %p278 = por %p276, %p277
      %p279 = scmp.ne.s32.totalorder %s268, %s271
      %p280 = scmp.eq.s32.totalorder %s39, 1
      %p281 = por %p279, %p280
      %p282 = scmp.ne.s32.totalorder %s271, %s272
      %p283 = scmp.eq.s32.totalorder %s39, 0
      %p284 = por %p282, %p283
      %p285 = scmp.ne.s32.totalorder %s271, %s272
      %p286 = scmp.eq.s32.totalorder %s40, 1
      %p287 = por %p285, %p286
      %p289 = scmp.ne.s32.totalorder %s272, %s288
      %p290 = scmp.eq.s32.totalorder %s40, 0
      %p291 = por %p289, %p290
      %s293 = sadd.s32 %s292, 1
      %p296 = scmp.eq.s32.totalorder %s34, 1
      %p297 = scmp.ne.s32.totalorder %s292, %s294
      %p298 = scmp.eq.s32.totalorder %s34, 0
      %p299 = por %p297, %p298
      %p300 = scmp.ne.s32.totalorder %s292, %s294
      %p301 = scmp.eq.s32.totalorder %s39, 1
      %p302 = por %p300, %p301
      %p303 = scmp.ne.s32.totalorder %s294, %s295
      %p304 = scmp.eq.s32.totalorder %s39, 0
      %p305 = por %p303, %p304
      %p306 = scmp.ne.s32.totalorder %s294, %s295
      %p307 = scmp.eq.s32.totalorder %s40, 1
      %p308 = por %p306, %p307
      %p310 = scmp.ne.s32.totalorder %s295, %s309
      %p311 = scmp.eq.s32.totalorder %s40, 0
      %p312 = por %p310, %p311
      %s314 = sadd.s32 %s313, 1
      %p317 = scmp.eq.s32.totalorder %s34, 1
      %p318 = scmp.ne.s32.totalorder %s313, %s315
      %p319 = scmp.eq.s32.totalorder %s34, 0
      %p320 = por %p318, %p319
      %p321 = scmp.ne.s32.totalorder %s313, %s315
      %p322 = scmp.eq.s32.totalorder %s39, 1
      %p323 = por %p321, %p322
      %p324 = scmp.ne.s32.totalorder %s315, %s316
      %p325 = scmp.eq.s32.totalorder %s39, 0
      %p326 = por %p324, %p325
      %p327 = scmp.ne.s32.totalorder %s315, %s316
      %p328 = scmp.eq.s32.totalorder %s40, 1
      %p329 = por %p327, %p328
      %p331 = scmp.ne.s32.totalorder %s316, %s330
      %p332 = scmp.eq.s32.totalorder %s40, 0
      %p333 = por %p331, %p332
      %s335 = sadd.s32 %s334, 1
      %p338 = scmp.eq.s32.totalorder %s34, 1
      %p339 = scmp.ne.s32.totalorder %s334, %s336
      %p340 = scmp.eq.s32.totalorder %s34, 0
      %p341 = por %p339, %p340
      %p342 = scmp.ne.s32.totalorder %s334, %s336
      %p343 = scmp.eq.s32.totalorder %s39, 1
      %p344 = por %p342, %p343
      %p345 = scmp.ne.s32.totalorder %s336, %s337
      %p346 = scmp.eq.s32.totalorder %s39, 0
      %p347 = por %p345, %p346
      %p348 = scmp.ne.s32.totalorder %s336, %s337
      %p349 = scmp.eq.s32.totalorder %s40, 1
      %p350 = por %p348, %p349
      %p352 = scmp.ne.s32.totalorder %s337, %s351
      %p353 = scmp.eq.s32.totalorder %s40, 0
      %p354 = por %p352, %p353
      %s355 = ssub.s32 %s41, %s53
      %s356 = ssub.s32 %s42, %s49
      %s357 = sor.u32 %s355, %s356
      %p358 = scmp.eq.s32.totalorder %s357, 0
      %s360 = sadd.s32 %s359, 1
      %s361 = scalar_select %p358, %s359, %s360
      %p364 = pneg %p358
      %p365 = scmp.eq.s32.totalorder %s34, 1
      %p366 = por %p364, %p365
      %p367 = scmp.ne.s32.totalorder %s359, %s362
      %p368 = scmp.eq.s32.totalorder %s34, 0
      %p369 = por %p367, %p368
      %p370 = scmp.ne.s32.totalorder %s359, %s362
      %p371 = scmp.eq.s32.totalorder %s39, 1
      %p372 = por %p370, %p371
      %p373 = scmp.ne.s32.totalorder %s362, %s363
      %p374 = scmp.eq.s32.totalorder %s39, 0
      %p375 = por %p373, %p374
      %p376 = scmp.ne.s32.totalorder %s362, %s363
      %p377 = scmp.eq.s32.totalorder %s40, 1
      %p378 = por %p376, %p377
      %p380 = scmp.ne.s32.totalorder %s363, %s379
      %p381 = scmp.eq.s32.totalorder %s40, 0
      %p382 = por %p380, %p381
      %s384 = sadd.s32 %s383, 1
      %p387 = scmp.eq.s32.totalorder %s34, 1
      %p388 = scmp.ne.s32.totalorder %s383, %s385
      %p389 = scmp.eq.s32.totalorder %s34, 0
      %p390 = por %p388, %p389
      %p391 = scmp.ne.s32.totalorder %s383, %s385
      %p392 = scmp.eq.s32.totalorder %s39, 1
      %p393 = por %p391, %p392
      %p394 = scmp.ne.s32.totalorder %s385, %s386
      %p395 = scmp.eq.s32.totalorder %s39, 0
      %p396 = por %p394, %p395
      %p397 = scmp.ne.s32.totalorder %s385, %s386
      %p398 = scmp.eq.s32.totalorder %s40, 1
      %p399 = por %p397, %p398
      %p401 = scmp.ne.s32.totalorder %s386, %s400
      %p402 = scmp.eq.s32.totalorder %s40, 0
      %p403 = por %p401, %p402
      %s405 = sadd.s32 %s404, 1
      %p408 = scmp.eq.s32.totalorder %s34, 1
      %p409 = scmp.ne.s32.totalorder %s404, %s406
      %p410 = scmp.eq.s32.totalorder %s34, 0
      %p411 = por %p409, %p410
      %p412 = scmp.ne.s32.totalorder %s404, %s406
      %p413 = scmp.eq.s32.totalorder %s39, 1
      %p414 = por %p412, %p413
      %p415 = scmp.ne.s32.totalorder %s406, %s407
      %p416 = scmp.eq.s32.totalorder %s39, 0
      %p417 = por %p415, %p416
      %p418 = scmp.ne.s32.totalorder %s406, %s407
      %p419 = scmp.eq.s32.totalorder %s40, 1
      %p420 = por %p418, %p419
      %p422 = scmp.ne.s32.totalorder %s407, %s421
      %p423 = scmp.eq.s32.totalorder %s40, 0
      %p424 = por %p422, %p423
      %s426 = sadd.s32 %s425, 1
      %p429 = scmp.eq.s32.totalorder %s34, 1
      %p430 = scmp.ne.s32.totalorder %s425, %s427
      %p431 = scmp.eq.s32.totalorder %s34, 0
      %p432 = por %p430, %p431
      %p433 = scmp.ne.s32.totalorder %s425, %s427
      %p434 = scmp.eq.s32.totalorder %s39, 1
      %p435 = por %p433, %p434
      %p436 = scmp.ne.s32.totalorder %s427, %s428
      %p437 = scmp.eq.s32.totalorder %s39, 0
      %p438 = por %p436, %p437
      %p439 = scmp.ne.s32.totalorder %s427, %s428
      %p440 = scmp.eq.s32.totalorder %s40, 1
      %p441 = por %p439, %p440
      %p443 = scmp.ne.s32.totalorder %s428, %s442
      %p444 = scmp.eq.s32.totalorder %s40, 0
      %p445 = por %p443, %p444
      %s446 = ssub.s32 %s41, %s53
      %s447 = ssub.s32 %s42, %s49
      %s448 = sor.u32 %s446, %s447
      %p449 = scmp.eq.s32.totalorder %s448, 0
      %s451 = sadd.s32 %s450, 1
      %s452 = scalar_select %p449, %s450, %s451
      %p455 = pneg %p449
      %p456 = scmp.eq.s32.totalorder %s34, 1
      %p457 = por %p455, %p456
      %p458 = scmp.ne.s32.totalorder %s450, %s453
      %p459 = scmp.eq.s32.totalorder %s34, 0
      %p460 = por %p458, %p459
      %p461 = scmp.ne.s32.totalorder %s450, %s453
      %p462 = scmp.eq.s32.totalorder %s39, 1
      %p463 = por %p461, %p462
      %p464 = scmp.ne.s32.totalorder %s453, %s454
      %p465 = scmp.eq.s32.totalorder %s39, 0
      %p466 = por %p464, %p465
      %p467 = scmp.ne.s32.totalorder %s453, %s454
      %p468 = scmp.eq.s32.totalorder %s40, 1
      %p469 = por %p467, %p468
      %p471 = scmp.ne.s32.totalorder %s454, %s470
      %p472 = scmp.eq.s32.totalorder %s40, 0
      %p473 = por %p471, %p472
      %s475 = sadd.s32 %s474, 1
      %p478 = scmp.eq.s32.totalorder %s34, 1
      %p479 = scmp.ne.s32.totalorder %s474, %s476
      %p480 = scmp.eq.s32.totalorder %s34, 0
      %p481 = por %p479, %p480
      %p482 = scmp.ne.s32.totalorder %s474, %s476
      %p483 = scmp.eq.s32.totalorder %s39, 1
      %p484 = por %p482, %p483
      %p485 = scmp.ne.s32.totalorder %s476, %s477
      %p486 = scmp.eq.s32.totalorder %s39, 0
      %p487 = por %p485, %p486
      %p488 = scmp.ne.s32.totalorder %s476, %s477
      %p489 = scmp.eq.s32.totalorder %s40, 1
      %p490 = por %p488, %p489
      %p492 = scmp.ne.s32.totalorder %s477, %s491
      %p493 = scmp.eq.s32.totalorder %s40, 0
      %p494 = por %p492, %p493
      %s495 = ssub.s32 %s41, %s53
      %s496 = ssub.s32 %s42, %s49
      %s497 = sor.u32 %s495, %s496
      %p498 = scmp.eq.s32.totalorder %s497, 0
      %s500 = sadd.s32 %s499, 1
      %s501 = scalar_select %p498, %s499, %s500
      %p504 = pneg %p498
      %p505 = scmp.eq.s32.totalorder %s34, 1
      %p506 = por %p504, %p505
      %p507 = scmp.ne.s32.totalorder %s499, %s502
      %p508 = scmp.eq.s32.totalorder %s34, 0
      %p509 = por %p507, %p508
      %p510 = scmp.ne.s32.totalorder %s499, %s502
      %p511 = scmp.eq.s32.totalorder %s39, 1
      %p512 = por %p510, %p511
      %p513 = scmp.ne.s32.totalorder %s502, %s503
      %p514 = scmp.eq.s32.totalorder %s39, 0
      %p515 = por %p513, %p514
      %p516 = scmp.ne.s32.totalorder %s502, %s503
      %p517 = scmp.eq.s32.totalorder %s40, 1
      %p518 = por %p516, %p517
      %p520 = scmp.ne.s32.totalorder %s503, %s519
      %p521 = scmp.eq.s32.totalorder %s40, 0
      %p522 = por %p520, %p521
      %p523 = scmp.le.s32.totalorder 1, %s34
      %p524 = scmp.lt.s32.totalorder %s34, 3
      %p525 = pnand %p523, %p524
      %p526 = pneg %p525
      // Predicated region
      $region9: #{tpu_custom_call.1} parent=5 // pred_check
        _
      $region10: #{tpu_custom_call.1} parent=5 // pred_check_branch
        %528 = sbr.rel (%p525) target = $region12
      $region11: #{tpu_custom_call.1} parent=5 // pred_region
        %s529 = ssub.s32 %s34, 1
        // Predicated region
        $region13: #{tpu_custom_call.1} parent=11 // pred_check
          %p530 = pneg %p123
        $region14: #{tpu_custom_call.1} parent=11 // pred_check_branch
          %532 = sbr.rel (%p530) target = $region16
        $region15: #{tpu_custom_call.1} parent=11 // pred_region
          _
        $region16: #{tpu_custom_call.1} parent=11 // pred_fallthru
          _
        // Predicated region
        $region17: #{tpu_custom_call.1} parent=11 // pred_check
          %p533 = pneg %p144
        $region18: #{tpu_custom_call.1} parent=11 // pred_check_branch
          %535 = sbr.rel (%p533) target = $region20
        $region19: #{tpu_custom_call.1} parent=11 // pred_region
          %s537 = ssub.s32 128, 128
          %538 = vsyncadd [#allocation3], %s537
          %s539 = sshll.u32 [#allocation2], 4
          %s540 = int_to_ptr.vmem [resolvable:$true] %s539
          %545 = dma.hbm_to_vmem [thread:$0]  %s3, 128, %s540, [#allocation3], 64, 64, 4
        $region20: #{tpu_custom_call.1} parent=11 // pred_fallthru
          _
        // Predicated region
        $region21: #{tpu_custom_call.1} parent=11 // pred_check
          %p546 = pneg %p165
        $region22: #{tpu_custom_call.1} parent=11 // pred_check_branch
          %548 = sbr.rel (%p546) target = $region24
        $region23: #{tpu_custom_call.1} parent=11 // pred_region
          _
        $region24: #{tpu_custom_call.1} parent=11 // pred_fallthru
          _
        // Predicated region
        $region25: #{tpu_custom_call.1} parent=11 // pred_check
          %p549 = pneg %p214
        $region26: #{tpu_custom_call.1} parent=11 // pred_check_branch
          %551 = sbr.rel (%p549) target = $region28
        $region27: #{tpu_custom_call.1} parent=11 // pred_region
          %s553 = ssub.s32 128, 128
          %554 = vsyncadd [#allocation6], %s553
          %s555 = sshll.u32 [#allocation7], 4
          %s556 = int_to_ptr.vmem [resolvable:$true] %s555
          %561 = dma.hbm_to_vmem [thread:$0]  %s6, 128, %s556, [#allocation6], 64, 64, 4
        $region28: #{tpu_custom_call.1} parent=11 // pred_fallthru
          _
        // Predicated region
        $region29: #{tpu_custom_call.1} parent=11 // pred_check
          %p562 = pneg %p235
        $region30: #{tpu_custom_call.1} parent=11 // pred_check_branch
          %564 = sbr.rel (%p562) target = $region32
        $region31: #{tpu_custom_call.1} parent=11 // pred_region
          %s566 = ssub.s32 64, 64
          %567 = vsyncadd [#allocation9], %s566
          %s569 = sshll.u32 [#allocation8], 4
          %s570 = int_to_ptr.vmem [resolvable:$true] %s569
          %572 = dma.hbm_to_vmem [thread:$0]  %s7, 64, %s570, [#allocation9]
        $region32: #{tpu_custom_call.1} parent=11 // pred_fallthru
          _
        // Predicated region
        $region33: #{tpu_custom_call.1} parent=11 // pred_check
          %p573 = pneg %p256
        $region34: #{tpu_custom_call.1} parent=11 // pred_check_branch
          %575 = sbr.rel (%p573) target = $region36
        $region35: #{tpu_custom_call.1} parent=11 // pred_region
          _
        $region36: #{tpu_custom_call.1} parent=11 // pred_fallthru
          _
        // Predicated region
        $region37: #{tpu_custom_call.1} parent=11 // pred_check
          %p576 = pneg %p305
        $region38: #{tpu_custom_call.1} parent=11 // pred_check_branch
          %578 = sbr.rel (%p576) target = $region40
        $region39: #{tpu_custom_call.1} parent=11 // pred_region
          %s580 = ssub.s32 64, 64
          %581 = vsyncadd [#allocation9], %s580
          %s583 = sshll.u32 [#allocation10], 4
          %s584 = int_to_ptr.vmem [resolvable:$true] %s583
          %586 = dma.hbm_to_vmem [thread:$0]  %s10, 64, %s584, [#allocation9]
        $region40: #{tpu_custom_call.1} parent=11 // pred_fallthru
          _
        // Predicated region
        $region41: #{tpu_custom_call.1} parent=11 // pred_check
          %p587 = pneg %p326
        $region42: #{tpu_custom_call.1} parent=11 // pred_check_branch
          %589 = sbr.rel (%p587) target = $region44
        $region43: #{tpu_custom_call.1} parent=11 // pred_region
          %s591 = ssub.s32 64, 64
          %592 = vsyncadd [#allocation12], %s591
          %s594 = sshll.u32 [#allocation11], 4
          %s595 = int_to_ptr.vmem [resolvable:$true] %s594
          %597 = dma.hbm_to_vmem [thread:$0]  %s11, 64, %s595, [#allocation12]
        $region44: #{tpu_custom_call.1} parent=11 // pred_fallthru
          _
        // Predicated region
        $region45: #{tpu_custom_call.1} parent=11 // pred_check
          %p598 = pneg %p347
        $region46: #{tpu_custom_call.1} parent=11 // pred_check_branch
          %600 = sbr.rel (%p598) target = $region48
        $region47: #{tpu_custom_call.1} parent=11 // pred_region
          _
        $region48: #{tpu_custom_call.1} parent=11 // pred_fallthru
          _
        // Predicated region
        $region49: #{tpu_custom_call.1} parent=11 // pred_check
          %p601 = pneg %p396
        $region50: #{tpu_custom_call.1} parent=11 // pred_check_branch
          %603 = sbr.rel (%p601) target = $region52
        $region51: #{tpu_custom_call.1} parent=11 // pred_region
          _
        $region52: #{tpu_custom_call.1} parent=11 // pred_fallthru
          _
        // Predicated region
        $region53: #{tpu_custom_call.1} parent=11 // pred_check
          %p604 = pneg %p417
        $region54: #{tpu_custom_call.1} parent=11 // pred_check_branch
          %606 = sbr.rel (%p604) target = $region56
        $region55: #{tpu_custom_call.1} parent=11 // pred_region
          _
        $region56: #{tpu_custom_call.1} parent=11 // pred_fallthru
          _
        // Predicated region
        $region57: #{tpu_custom_call.1} parent=11 // pred_check
          %p607 = pneg %p438
        $region58: #{tpu_custom_call.1} parent=11 // pred_check_branch
          %609 = sbr.rel (%p607) target = $region60
        $region59: #{tpu_custom_call.1} parent=11 // pred_region
          _
        $region60: #{tpu_custom_call.1} parent=11 // pred_fallthru
          _
        // Predicated region
        $region61: #{tpu_custom_call.1} parent=11 // pred_check
          %p610 = pneg %p487
        $region62: #{tpu_custom_call.1} parent=11 // pred_check_branch
          %612 = sbr.rel (%p610) target = $region64
        $region63: #{tpu_custom_call.1} parent=11 // pred_region
          _
        $region64: #{tpu_custom_call.1} parent=11 // pred_fallthru
          _
      $region12: #{tpu_custom_call.1} parent=5 // pred_fallthru
        _
      %p613 = scmp.lt.s32.totalorder %s34, 2
      // Predicated region
      $region65: #{tpu_custom_call.1} parent=5 // pred_check
        %p614 = pneg %p613
      $region66: #{tpu_custom_call.1} parent=5 // pred_check_branch
        %616 = sbr.rel (%p614) target = $region68
      $region67: #{tpu_custom_call.1} parent=5 // pred_region
        // Predicated region
        $region69: #{tpu_custom_call.1} parent=67 // pred_check
          %p617 = pneg %p68
        $region70: #{tpu_custom_call.1} parent=67 // pred_check_branch
          %619 = sbr.rel (%p617) target = $region72
        $region71: #{tpu_custom_call.1} parent=67 // pred_region
          %s620 = smul.u32 2, %s42
          %p621 = scmp.lt.s32.totalorder %s41, 1
          %s622 = scalar_select %p621, %s41, 1
          %p623 = scmp.lt.s32.totalorder %s620, 1
          %s624 = scalar_select %p623, %s620, 1
          %s625 = smul.addr %s622, 8
          %s626 = sadd.s32 %s624, %s625
          %s627 = smul.addr %s626, 8
          %s628 = scalar_lea.vmem %s0, %s627
          %s629 = smul.u32 2, %s42
        $region72: #{tpu_custom_call.1} parent=67 // pred_fallthru
          _
        // Predicated region
        $region73: #{tpu_custom_call.1} parent=67 // pred_check
          %p630 = pneg %p96
        $region74: #{tpu_custom_call.1} parent=67 // pred_check_branch
          %632 = sbr.rel (%p630) target = $region76
        $region75: #{tpu_custom_call.1} parent=67 // pred_region
          %s633 = smul.u32 2, %s42
          %p634 = scmp.lt.s32.totalorder %s41, 1
          %s635 = scalar_select %p634, %s41, 1
          %p636 = scmp.lt.s32.totalorder %s633, 1
          %s637 = scalar_select %p636, %s633, 1
          %s638 = smul.addr %s635, 6
          %s639 = sadd.s32 %s637, %s638
          %s640 = smul.addr %s639, 8
          %s641 = scalar_lea.vmem %s1, %s640
          %s642 = smul.u32 2, %s42
        $region76: #{tpu_custom_call.1} parent=67 // pred_fallthru
          _
        // Predicated region
        $region77: #{tpu_custom_call.1} parent=67 // pred_check
          %p643 = pneg %p187
        $region78: #{tpu_custom_call.1} parent=67 // pred_check_branch
          %645 = sbr.rel (%p643) target = $region80
        $region79: #{tpu_custom_call.1} parent=67 // pred_region
          %s646 = sand.u32 %s34, 1
          %s647 = scalar_lea.sflag [#allocation6], %s646
          %s648 = sand.u32 %s177, 1
          %s649 = smul.addr %s648, 32
          %s650 = scalar_lea.vmem [#allocation5], %s649
          %s651 = smul.u32 2, %s42
          %s653 = ssub.s32 512, 512
          %654 = vsyncadd %s647, %s653
          %s655 = smul.addr %s41, 4
          %s656 = sadd.s32 %s651, %s655
          %s657 = smul.addr %s656, 128
          %s658 = scalar_lea.hbm %s5, %s657
          %s659 = sshll.u32 %s650, 4
          %s660 = int_to_ptr.vmem [resolvable:$true] %s659
          %665 = dma.hbm_to_vmem [thread:$0]  %s658, 512, %s660, %s647, 256, 256, 16
        $region80: #{tpu_custom_call.1} parent=67 // pred_fallthru
          _
        // Predicated region
        $region81: #{tpu_custom_call.1} parent=67 // pred_check
          %p666 = pneg %p278
        $region82: #{tpu_custom_call.1} parent=67 // pred_check_branch
          %668 = sbr.rel (%p666) target = $region84
        $region83: #{tpu_custom_call.1} parent=67 // pred_region
          %s669 = smul.u32 2, %s42
          %p670 = scmp.lt.s32.totalorder %s41, 1
          %s671 = scalar_select %p670, %s41, 1
          %p672 = scmp.lt.s32.totalorder %s669, 1
          %s673 = scalar_select %p672, %s669, 1
          %s674 = smul.addr %s671, 4
          %s675 = sadd.s32 %s673, %s674
          %s676 = smul.addr %s675, 8
          %s677 = scalar_lea.vmem %s9, %s676
          %s678 = smul.u32 2, %s42
        $region84: #{tpu_custom_call.1} parent=67 // pred_fallthru
          _
        // Predicated region
        $region85: #{tpu_custom_call.1} parent=67 // pred_check
          %p679 = pneg %p369
        $region86: #{tpu_custom_call.1} parent=67 // pred_check_branch
          %681 = sbr.rel (%p679) target = $region88
        $region87: #{tpu_custom_call.1} parent=67 // pred_region
          %s682 = smul.u32 2, %s42
          %p683 = scmp.lt.s32.totalorder %s41, 1
          %s684 = scalar_select %p683, %s41, 1
          %p685 = scmp.lt.s32.totalorder %s682, 1
          %s686 = scalar_select %p685, %s682, 1
          %s687 = smul.addr %s684, 2
          %s688 = sadd.s32 %s686, %s687
          %s689 = smul.addr %s688, 8
          %s690 = scalar_lea.vmem %s13, %s689
          %s691 = smul.u32 2, %s42
        $region88: #{tpu_custom_call.1} parent=67 // pred_fallthru
          _
        // Predicated region
        $region89: #{tpu_custom_call.1} parent=67 // pred_check
          %p692 = pneg %p460
        $region90: #{tpu_custom_call.1} parent=67 // pred_check_branch
          %694 = sbr.rel (%p692) target = $region92
        $region91: #{tpu_custom_call.1} parent=67 // pred_region
          %s695 = smul.u32 2, %s42
          %p696 = scmp.lt.s32.totalorder %s41, 1
          %s697 = scalar_select %p696, %s41, 1
          %p698 = scmp.lt.s32.totalorder %s695, 1
          %s699 = scalar_select %p698, %s695, 1
          %s700 = smul.addr %s697, 2
          %s701 = sadd.s32 %s699, %s700
          %s702 = smul.addr %s701, 8
          %s703 = scalar_lea.vmem %s17, %s702
          %s704 = smul.u32 2, %s42
        $region92: #{tpu_custom_call.1} parent=67 // pred_fallthru
          _
      $region68: #{tpu_custom_call.1} parent=5 // pred_fallthru
        _
      %p705 = scmp.le.s32.totalorder 1, %s34
      %p706 = scmp.lt.s32.totalorder %s34, 3
      %p707 = pnand %p705, %p706
      %p708 = pneg %p707
      // Predicated region
      $region93: #{tpu_custom_call.1} parent=5 // pred_check
        _
      $region94: #{tpu_custom_call.1} parent=5 // pred_check_branch
        %710 = sbr.rel (%p707) target = $region96
      $region95: #{tpu_custom_call.1} parent=5 // pred_region
        %s711 = ssub.s32 %s34, 1
        // Predicated region
        $region97: #{tpu_custom_call.1} parent=95 // pred_check
          %p712 = pneg %p144
        $region98: #{tpu_custom_call.1} parent=95 // pred_check_branch
          %714 = sbr.rel (%p712) target = $region100
        $region99: #{tpu_custom_call.1} parent=95 // pred_region
          %715 = dma.done [#allocation3], 128
        $region100: #{tpu_custom_call.1} parent=95 // pred_fallthru
          _
        %s716 = sand.u32 %s39, 1
        %s717 = scalar_lea.sflag [#allocation6], %s716
        %s718 = sand.u32 %s180, 1
        %s719 = smul.addr %s718, 32
        %s720 = scalar_lea.vmem [#allocation5], %s719
        // Predicated region
        $region101: #{tpu_custom_call.1} parent=95 // pred_check
          %p721 = pneg %p193
        $region102: #{tpu_custom_call.1} parent=95 // pred_check_branch
          %723 = sbr.rel (%p721) target = $region104
        $region103: #{tpu_custom_call.1} parent=95 // pred_region
          %724 = dma.done %s717, 512
        $region104: #{tpu_custom_call.1} parent=95 // pred_fallthru
          _
        // Predicated region
        $region105: #{tpu_custom_call.1} parent=95 // pred_check
          %p725 = pneg %p214
        $region106: #{tpu_custom_call.1} parent=95 // pred_check_branch
          %727 = sbr.rel (%p725) target = $region108
        $region107: #{tpu_custom_call.1} parent=95 // pred_region
          %728 = dma.done [#allocation6], 128
        $region108: #{tpu_custom_call.1} parent=95 // pred_fallthru
          _
        // Predicated region
        $region109: #{tpu_custom_call.1} parent=95 // pred_check
          %p729 = pneg %p235
        $region110: #{tpu_custom_call.1} parent=95 // pred_check_branch
          %731 = sbr.rel (%p729) target = $region112
        $region111: #{tpu_custom_call.1} parent=95 // pred_region
          %732 = dma.done [#allocation9], 64
        $region112: #{tpu_custom_call.1} parent=95 // pred_fallthru
          _
        // Predicated region
        $region113: #{tpu_custom_call.1} parent=95 // pred_check
          %p733 = pneg %p305
        $region114: #{tpu_custom_call.1} parent=95 // pred_check_branch
          %735 = sbr.rel (%p733) target = $region116
        $region115: #{tpu_custom_call.1} parent=95 // pred_region
          %736 = dma.done [#allocation9], 64
        $region116: #{tpu_custom_call.1} parent=95 // pred_fallthru
          _
        // Predicated region
        $region117: #{tpu_custom_call.1} parent=95 // pred_check
          %p737 = pneg %p326
        $region118: #{tpu_custom_call.1} parent=95 // pred_check_branch
          %739 = sbr.rel (%p737) target = $region120
        $region119: #{tpu_custom_call.1} parent=95 // pred_region
          %740 = dma.done [#allocation12], 64
        $region120: #{tpu_custom_call.1} parent=95 // pred_fallthru
          _
        %s741 = smul.u32 2, %s44
        %p742 = scmp.lt.s32.totalorder %s43, 1
        %s743 = scalar_select %p742, %s43, 1
        %p744 = scmp.lt.s32.totalorder %s741, 1
        %s745 = scalar_select %p744, %s741, 1
        %s746 = smul.addr %s743, 8
        %s747 = sadd.s32 %s745, %s746
        %s748 = smul.addr %s747, 8
        %s749 = scalar_lea.vmem %s0, %s748
        %p750 = pneg %p74
        %p751 = pneg %p71
        %s752 = smul.u32 2, %s44
        %p753 = scmp.lt.s32.totalorder %s43, 1
        %s754 = scalar_select %p753, %s43, 1
        %p755 = scmp.lt.s32.totalorder %s752, 1
        %s756 = scalar_select %p755, %s752, 1
        %s757 = smul.addr %s754, 6
        %s758 = sadd.s32 %s756, %s757
        %s759 = smul.addr %s758, 8
        %s760 = scalar_lea.vmem %s1, %s759
        %p761 = pneg %p102
        %p762 = pneg %p99
        %p763 = pneg %p123
        %p764 = pneg %p120
        %p765 = pneg %p144
        %p766 = pneg %p141
        %p767 = pneg %p165
        %p768 = pneg %p162
        %s769 = sand.u32 %s39, 1
        %s770 = scalar_lea.sflag [#allocation6], %s769
        %s771 = sand.u32 %s180, 1
        %s772 = smul.addr %s771, 32
        %s773 = scalar_lea.vmem [#allocation5], %s772
        %p774 = pneg %p193
        %p775 = pneg %p190
        %p776 = pneg %p214
        %p777 = pneg %p211
        %p778 = pneg %p235
        %p779 = pneg %p232
        %p780 = pneg %p256
        %p781 = pneg %p253
        %s782 = smul.u32 2, %s44
        %p783 = scmp.lt.s32.totalorder %s43, 1
        %s784 = scalar_select %p783, %s43, 1
        %p785 = scmp.lt.s32.totalorder %s782, 1
        %s786 = scalar_select %p785, %s782, 1
        %s787 = smul.addr %s784, 4
        %s788 = sadd.s32 %s786, %s787
        %s789 = smul.addr %s788, 8
        %s790 = scalar_lea.vmem %s9, %s789
        %p791 = pneg %p284
        %p792 = pneg %p281
        %p793 = pneg %p305
        %p794 = pneg %p302
        %p795 = pneg %p326
        %p796 = pneg %p323
        %p797 = pneg %p347
        %p798 = pneg %p344
        %s799 = smul.u32 2, %s44
        %p800 = scmp.lt.s32.totalorder %s43, 1
        %s801 = scalar_select %p800, %s43, 1
        %p802 = scmp.lt.s32.totalorder %s799, 1
        %s803 = scalar_select %p802, %s799, 1
        %s804 = smul.addr %s801, 2
        %s805 = sadd.s32 %s803, %s804
        %s806 = smul.addr %s805, 8
        %s807 = scalar_lea.vmem %s13, %s806
        %p808 = pneg %p375
        %p809 = pneg %p372
        %p810 = pneg %p396
        %p811 = pneg %p393
        %p812 = pneg %p417
        %p813 = pneg %p414
        %p814 = pneg %p438
        %p815 = pneg %p435
        %s816 = smul.u32 2, %s44
        %p817 = scmp.lt.s32.totalorder %s43, 1
        %s818 = scalar_select %p817, %s43, 1
        %p819 = scmp.lt.s32.totalorder %s816, 1
        %s820 = scalar_select %p819, %s816, 1
        %s821 = smul.addr %s818, 2
        %s822 = sadd.s32 %s820, %s821
        %s823 = smul.addr %s822, 8
        %s824 = scalar_lea.vmem %s17, %s823
        %p825 = pneg %p466
        %p826 = pneg %p463
        %p827 = pneg %p487
        %p828 = pneg %p484
        %p829 = pneg %p515
        %p830 = pneg %p512
        %s831 = sand.u32 %s502, 1
        %s832 = scalar_lea.sflag [#allocation4], %s831
        %s833 = sand.u32 %s502, 1
        %s834 = smul.addr %s833, 8
        %s835 = scalar_lea.vmem [#allocation13], %s834
        %s836 = smul.u32 2, %s44
        %p837 = scmp.lt.s32.totalorder %s43, 1
        %s838 = scalar_select %p837, %s43, 1
        %p839 = scmp.lt.s32.totalorder %s836, 1
        %s840 = scalar_select %p839, %s836, 1
        %s841 = smul.addr %s838, 8
        %s842 = sadd.s32 %s840, %s841
        %s843 = smul.addr %s842, 8
        %s844 = scalar_lea.vmem %s0, %s843
        %s845 = smul.u32 2, %s44
        %s846 = smul.u32 2, %s44
        %p847 = scmp.lt.s32.totalorder %s43, 1
        %s848 = scalar_select %p847, %s43, 1
        %p849 = scmp.lt.s32.totalorder %s846, 1
        %s850 = scalar_select %p849, %s846, 1
        %s851 = smul.addr %s848, 6
        %s852 = sadd.s32 %s850, %s851
        %s853 = smul.addr %s852, 8
        %s854 = scalar_lea.vmem %s1, %s853
        %s855 = smul.u32 2, %s44
        %s856 = smul.u32 2, %s44
        %s857 = smul.u32 2, %s44
        %p858 = scmp.lt.s32.totalorder %s43, 1
        %s859 = scalar_select %p858, %s43, 1
        %p860 = scmp.lt.s32.totalorder %s857, 1
        %s861 = scalar_select %p860, %s857, 1
        %s862 = smul.addr %s859, 4
        %s863 = sadd.s32 %s861, %s862
        %s864 = smul.addr %s863, 8
        %s865 = scalar_lea.vmem %s9, %s864
        %s866 = smul.u32 2, %s44
        %s867 = smul.u32 2, %s44
        %p868 = scmp.lt.s32.totalorder %s43, 1
        %s869 = scalar_select %p868, %s43, 1
        %p870 = scmp.lt.s32.totalorder %s867, 1
        %s871 = scalar_select %p870, %s867, 1
        %s872 = smul.addr %s869, 2
        %s873 = sadd.s32 %s871, %s872
        %s874 = smul.addr %s873, 8
        %s875 = scalar_lea.vmem %s13, %s874
        %s876 = smul.u32 2, %s44
        %s877 = smul.u32 2, %s44
        %p878 = scmp.lt.s32.totalorder %s43, 1
        %s879 = scalar_select %p878, %s43, 1
        %p880 = scmp.lt.s32.totalorder %s877, 1
        %s881 = scalar_select %p880, %s877, 1
        %s882 = smul.addr %s879, 2
        %s883 = sadd.s32 %s881, %s882
        %s884 = smul.addr %s883, 8
        %s885 = scalar_lea.vmem %s17, %s884
        %s886 = smul.u32 2, %s44
        %s887 = smul.u32 2, %s44
        %v889 = vld [vmem:[%s844] sm:$0xff]
        %v890 = vld [vmem:[%s844 + $0x8] sm:$0xff]
        %v891 = vld [vmem:[%s844 + $0x10] sm:$0xff]
        %v892 = vld [vmem:[%s844 + $0x18] sm:$0xff]
        %v893 = vld [vmem:[%s844 + $0x20] sm:$0xff]
        %v894 = vld [vmem:[%s844 + $0x28] sm:$0xff]
        %v895 = vld [vmem:[%s844 + $0x30] sm:$0xff]
        %v896 = vld [vmem:[%s844 + $0x38] sm:$0xff]
        %v897 = vld [vmem:[%s854] sm:$0xff]
        %v898 = vld [vmem:[%s854 + $0x8] sm:$0xff]
        %v899 = vld [vmem:[%s854 + $0x10] sm:$0xff]
        %v900 = vld [vmem:[%s854 + $0x18] sm:$0xff]
        %v901 = vld [vmem:[%s854 + $0x20] sm:$0xff]
        %v902 = vld [vmem:[%s854 + $0x28] sm:$0xff]
        %v903 = vld [vmem:[%s2] sm:$0xf]
        %v904 = vld [vmem:[%s2 + $0x4] sm:$0xf]
        %v905 = vld [vmem:[%s2 + $0x8] sm:$0xf]
        %v906 = vld [vmem:[%s2 + $0xc] sm:$0xf]
        %v907 = vld [vmem:[#allocation2] sm:$0xf]
        %v908 = vld [vmem:[#allocation2 + $0x4] sm:$0xf]
        %v909 = vld [vmem:[%s4] sm:$0xff]
        %v910 = vld [vmem:[%s4 + $0x8] sm:$0xff]
        %v911 = vpack.c.bf16 %v899, %v897
        %v912 = vpack.c.bf16 %v900, %v898
        %v913 = vpack.c.bf16 %v901, %v901
        %v914 = vpack.c.bf16 %v902, %v902
        %v919 = vunpack.c.l.b16 %v903
        %v920 = vunpack.c.l.b16 %v904
        %v921 = vunpack.c.l.b16 %v905
        %v922 = vunpack.c.l.b16 %v906
        %v923 = vpack.c.b16 %v920, %v919
        %v924 = vpack.c.b16 %v922, %v921
        %vm925 = vcmask 195584
        %v927 = vsel %vm925, %v923, 0
        %v930 = vsel %vm925, %v924, 0
        %vm932 = vcmask 1043456
        %v934 = vsel %vm932, %v913, 0
        %v937 = vsel %vm932, %v914, 0
        %939 = vmatprep.subr.bf16.mxu0 %v912
        %940 = vmatpush1.bf16.msra.mxu0 %v911
        %941 = vmatprep.subr.bf16.mxu0 %v937
        %942 = vmatpush1.bf16.msra.mxu0 %v934
        %943 = vmatprep.subr.bf16.mxu0 0
        %944 = vmatpush1.bf16.msra.mxu0 0
        %945 = vmatprep.subr.bf16.mxu0 0
        %946 = vmatpush1.bf16.msra.mxu0 0
        %947 = vmatprep.subr.bf16.mxu0 0
        %948 = vmatpush1.bf16.msra.mxu0 0
        %949 = vmatprep.subr.bf16.mxu0 0
        %950 = vmatpush1.bf16.msra.mxu0 0
        %951 = vmatprep.subr.bf16.mxu0 0
        %952 = vmatpush1.bf16.msra.mxu0 0
        %953 = vmatprep.subr.bf16.mxu0 0
        %954 = vmatpush1.bf16.msra.mxu0 0
        %955 = vmatprep.subr.bf16.mxu0 0
        %956 = vmatpush1.bf16.msra.mxu0 0
        %957 = vmatprep.subr.bf16.mxu0 0
        %958 = vmatpush1.bf16.msra.mxu0 0
        %959 = vmatprep.subr.bf16.mxu0 0
        %960 = vmatpush1.bf16.msra.mxu0 0
        %961 = vmatprep.subr.bf16.mxu0 0
        %962 = vmatpush1.bf16.msra.mxu0 0
        %963 = vmatprep.subr.bf16.mxu0 0
        %964 = vmatpush1.bf16.msra.mxu0 0
        %965 = vmatprep.subr.bf16.mxu0 0
        %966 = vmatpush1.bf16.msra.mxu0 0
        %967 = vmatprep.subr.bf16.mxu0 0
        %968 = vmatpush1.bf16.msra.mxu0 0
        %969 = vmatprep.subr.bf16.mxu0 0
        %970 = vmatpush1.bf16.msra.mxu0 0
        %971 = vmatprep.mubr.bf16.mxu0 0
        %972 = vmatmul.mubr.bf16.gmra.mrb[0].mxu0 %v927
        %v973 = vpop.f32.mrb[0].mxu0
        %v974 = vadd.f32 0.0, %v973
        %v975 = vpop.f32.mrb[0].mxu0
        %v976 = vadd.f32 0.0, %v975
        %v977 = vpop.f32.mrb[0].mxu0
        %v978 = vadd.f32 0.0, %v977
        %v979 = vpop.f32.mrb[0].mxu0
        %v980 = vadd.f32 0.0, %v979
        %981 = vmatprep.mubr.bf16.mxu0 0
        %982 = vmatmul.mubr.bf16.gmra.mrb[0].mxu0 %v930
        %v983 = vpop.f32.mrb[0].mxu0
        %v984 = vadd.f32 0.0, %v983
        %v985 = vpop.f32.mrb[0].mxu0
        %v986 = vadd.f32 0.0, %v985
        %v987 = vpop.f32.mrb[0].mxu0
        %v988 = vadd.f32 0.0, %v987
        %v989 = vpop.f32.mrb[0].mxu0
        %v990 = vadd.f32 0.0, %v989
        %991 = vdwg.mxu0
        %v992 = vadd.f32 %v889, %v974
        %v993 = vadd.f32 %v890, %v976
        %v994 = vadd.f32 %v891, %v978
        %v995 = vadd.f32 %v892, %v980
        %v996 = vadd.f32 %v893, %v984
        %v997 = vadd.f32 %v894, %v986
        %v998 = vadd.f32 %v895, %v988
        %v999 = vadd.f32 %v896, %v990
        %v1000 = vpack.c.bf16 %v994, %v992
        %v1001 = vpack.c.bf16 %v995, %v993
        %v1002 = vpack.c.bf16 %v998, %v996
        %v1003 = vpack.c.bf16 %v999, %v997
        %1005 = vset.pattern.permute.xlu0 0
        %1006 = vperm.xlu0 %1005, %v909
        %v1007 = vpop.permute.xlu0 %1006
        %1010 = vset.pattern.permute.xlu0 0
        %1011 = vperm.xlu0 %1010, %v910
        %v1012 = vpop.permute.xlu0 %1011
        %v1016 = vunpack.c.l.b16 %v907
        %v1017 = vunpack.c.l.b16 %v908
        %v1018 = vpack.c.b16 %v1017, %v1016
        %vm1019 = vcmask 261120
        %v1021 = vsel %vm1019, %v1018, 0
        %1023 = vmatprep.subr.bf16.mxu0 %v1001
        %1024 = vmatpush1.bf16.msra.mxu0 %v1000
        %1025 = vmatprep.subr.bf16.mxu0 %v1003
        %1026 = vmatpush1.bf16.msra.mxu0 %v1002
        %1027 = vmatprep.subr.bf16.mxu0 0
        %1028 = vmatpush1.bf16.msra.mxu0 0
        %1029 = vmatprep.subr.bf16.mxu0 0
        %1030 = vmatpush1.bf16.msra.mxu0 0
        %1031 = vmatprep.subr.bf16.mxu0 0
        %1032 = vmatpush1.bf16.msra.mxu0 0
        %1033 = vmatprep.subr.bf16.mxu0 0
        %1034 = vmatpush1.bf16.msra.mxu0 0
        %1035 = vmatprep.subr.bf16.mxu0 0
        %1036 = vmatpush1.bf16.msra.mxu0 0
        %1037 = vmatprep.subr.bf16.mxu0 0
        %1038 = vmatpush1.bf16.msra.mxu0 0
        %1039 = vmatprep.subr.bf16.mxu0 0
        %1040 = vmatpush1.bf16.msra.mxu0 0
        %1041 = vmatprep.subr.bf16.mxu0 0
        %1042 = vmatpush1.bf16.msra.mxu0 0
        %1043 = vmatprep.subr.bf16.mxu0 0
        %1044 = vmatpush1.bf16.msra.mxu0 0
        %1045 = vmatprep.subr.bf16.mxu0 0
        %1046 = vmatpush1.bf16.msra.mxu0 0
        %1047 = vmatprep.subr.bf16.mxu0 0
        %1048 = vmatpush1.bf16.msra.mxu0 0
        %1049 = vmatprep.subr.bf16.mxu0 0
        %1050 = vmatpush1.bf16.msra.mxu0 0
        %1051 = vmatprep.subr.bf16.mxu0 0
        %1052 = vmatpush1.bf16.msra.mxu0 0
        %1053 = vmatprep.subr.bf16.mxu0 0
        %1054 = vmatpush1.bf16.msra.mxu0 0
        %1055 = vmatprep.mubr.bf16.mxu0 0
        %1056 = vmatmul.mubr.bf16.gmra.mrb[0].mxu0 %v1021
        %v1057 = vpop.f32.mrb[0].mxu0
        %v1058 = vadd.f32 %v1007, %v1057
        %v1059 = vpop.f32.mrb[0].mxu0
        %v1060 = vadd.f32 %v1007, %v1059
        %v1061 = vpop.f32.mrb[0].mxu0
        %v1062 = vadd.f32 %v1012, %v1061
        %v1063 = vpop.f32.mrb[0].mxu0
        %v1064 = vadd.f32 %v1012, %v1063
        %1065 = vdwg.mxu0
        %v1066 = vmax.f32 %v1058, 0.0
        %v1067 = vmax.f32 %v1060, 0.0
        %v1068 = vmax.f32 %v1062, 0.0
        %v1069 = vmax.f32 %v1064, 0.0
        %v1070 = vld [vmem:[%s720] sm:$0xff]
        %v1071 = vld [vmem:[%s720 + $0x8] sm:$0xff]
        %v1072 = vld [vmem:[%s720 + $0x10] sm:$0xff]
        %v1073 = vld [vmem:[%s720 + $0x18] sm:$0xff]
        %v1074 = vld [vmem:[#allocation7] sm:$0xf]
        %v1075 = vld [vmem:[#allocation7 + $0x4] sm:$0xf]
        %v1076 = vld [vmem:[#allocation8] sm:$0xf]
        %v1077 = vld [vmem:[%s8] sm:$0xff]
        %v1078 = vpack.c.bf16 %v1072, %v1070
        %v1079 = vpack.c.bf16 %v1073, %v1071
        %v1082 = vunpack.c.l.b16 %v1074
        %v1083 = vunpack.c.l.b16 %v1075
        %v1084 = vpack.c.b16 %v1083, %v1082
        %vm1085 = vcmask 130048
        %v1087 = vsel %vm1085, %v1084, 0
        %1089 = vmatprep.subr.bf16.mxu0 %v1079
        %1090 = vmatpush1.bf16.msra.mxu0 %v1078
        %1091 = vmatprep.subr.bf16.mxu0 0
        %1092 = vmatpush1.bf16.msra.mxu0 0
        %1093 = vmatprep.subr.bf16.mxu0 0
        %1094 = vmatpush1.bf16.msra.mxu0 0
        %1095 = vmatprep.subr.bf16.mxu0 0
        %1096 = vmatpush1.bf16.msra.mxu0 0
        %1097 = vmatprep.subr.bf16.mxu0 0
        %1098 = vmatpush1.bf16.msra.mxu0 0
        %1099 = vmatprep.subr.bf16.mxu0 0
        %1100 = vmatpush1.bf16.msra.mxu0 0
        %1101 = vmatprep.subr.bf16.mxu0 0
        %1102 = vmatpush1.bf16.msra.mxu0 0
        %1103 = vmatprep.subr.bf16.mxu0 0
        %1104 = vmatpush1.bf16.msra.mxu0 0
        %1105 = vmatprep.subr.bf16.mxu0 0
        %1106 = vmatpush1.bf16.msra.mxu0 0
        %1107 = vmatprep.subr.bf16.mxu0 0
        %1108 = vmatpush1.bf16.msra.mxu0 0
        %1109 = vmatprep.subr.bf16.mxu0 0
        %1110 = vmatpush1.bf16.msra.mxu0 0
        %1111 = vmatprep.subr.bf16.mxu0 0
        %1112 = vmatpush1.bf16.msra.mxu0 0
        %1113 = vmatprep.subr.bf16.mxu0 0
        %1114 = vmatpush1.bf16.msra.mxu0 0
        %1115 = vmatprep.subr.bf16.mxu0 0
        %1116 = vmatpush1.bf16.msra.mxu0 0
        %1117 = vmatprep.subr.bf16.mxu0 0
        %1118 = vmatpush1.bf16.msra.mxu0 0
        %1119 = vmatprep.subr.bf16.mxu0 0
        %1120 = vmatpush1.bf16.msra.mxu0 0
        %1121 = vmatprep.mubr.bf16.mxu0 0
        %1122 = vmatmul.mubr.bf16.gmra.mrb[0].mxu0 %v1087
        %v1123 = vpop.f32.mrb[0].mxu0
        %v1124 = vadd.f32 0.0, %v1123
        %v1125 = vpop.f32.mrb[0].mxu0
        %v1126 = vadd.f32 0.0, %v1125
        %v1127 = vpop.f32.mrb[0].mxu0
        %v1128 = vadd.f32 0.0, %v1127
        %v1129 = vpop.f32.mrb[0].mxu0
        %v1130 = vadd.f32 0.0, %v1129
        %1131 = vdwg.mxu0
        %v1132 = vadd.f32 %v1066, %v1124
        %v1133 = vadd.f32 %v1067, %v1126
        %v1134 = vadd.f32 %v1068, %v1128
        %v1135 = vadd.f32 %v1069, %v1130
        %v1136 = vpack.c.bf16 %v1134, %v1132
        %v1137 = vpack.c.bf16 %v1135, %v1133
        %1139 = vset.pattern.permute.xlu0 0
        %1140 = vperm.xlu0 %1139, %v1077
        %v1141 = vpop.permute.xlu0 %1140
        %v1144 = vsel %vm1085, %v1076, 0
        %1146 = vmatprep.subr.bf16.mxu0 %v1137
        %1147 = vmatpush1.bf16.msra.mxu0 %v1136
        %1148 = vmatprep.subr.bf16.mxu0 0
        %1149 = vmatpush1.bf16.msra.mxu0 0
        %1150 = vmatprep.subr.bf16.mxu0 0
        %1151 = vmatpush1.bf16.msra.mxu0 0
        %1152 = vmatprep.subr.bf16.mxu0 0
        %1153 = vmatpush1.bf16.msra.mxu0 0
        %1154 = vmatprep.subr.bf16.mxu0 0
        %1155 = vmatpush1.bf16.msra.mxu0 0
        %1156 = vmatprep.subr.bf16.mxu0 0
        %1157 = vmatpush1.bf16.msra.mxu0 0
        %1158 = vmatprep.subr.bf16.mxu0 0
        %1159 = vmatpush1.bf16.msra.mxu0 0
        %1160 = vmatprep.subr.bf16.mxu0 0
        %1161 = vmatpush1.bf16.msra.mxu0 0
        %1162 = vmatprep.subr.bf16.mxu0 0
        %1163 = vmatpush1.bf16.msra.mxu0 0
        %1164 = vmatprep.subr.bf16.mxu0 0
        %1165 = vmatpush1.bf16.msra.mxu0 0
        %1166 = vmatprep.subr.bf16.mxu0 0
        %1167 = vmatpush1.bf16.msra.mxu0 0
        %1168 = vmatprep.subr.bf16.mxu0 0
        %1169 = vmatpush1.bf16.msra.mxu0 0
        %1170 = vmatprep.subr.bf16.mxu0 0
        %1171 = vmatpush1.bf16.msra.mxu0 0
        %1172 = vmatprep.subr.bf16.mxu0 0
        %1173 = vmatpush1.bf16.msra.mxu0 0
        %1174 = vmatprep.subr.bf16.mxu0 0
        %1175 = vmatpush1.bf16.msra.mxu0 0
        %1176 = vmatprep.subr.bf16.mxu0 0
        %1177 = vmatpush1.bf16.msra.mxu0 0
        %1178 = vmatprep.mubr.bf16.mxu0 0
        %1179 = vmatmul.mubr.bf16.gmra.mrb[0].mxu0 %v1144
        %v1180 = vpop.f32.mrb[0].mxu0
        %v1181 = vadd.f32 %v1141, %v1180
        %v1182 = vpop.f32.mrb[0].mxu0
        %v1183 = vadd.f32 %v1141, %v1182
        %v1184 = vpop.f32.mrb[0].mxu0
        %v1185 = vpop.f32.mrb[0].mxu0
        %1186 = vdwg.mxu0
        %v1187 = vmax.f32 %v1181, 0.0
        %v1188 = vmax.f32 %v1183, 0.0
        %v1189 = vld [vmem:[%s865] sm:$0xff]
        %v1190 = vld [vmem:[%s865 + $0x8] sm:$0xff]
        %v1191 = vld [vmem:[%s865 + $0x10] sm:$0xf]
        %v1192 = vld [vmem:[%s865 + $0x18] sm:$0xf]
        %v1193 = vld [vmem:[#allocation10] sm:$0xf]
        %v1194 = vld [vmem:[#allocation11] sm:$0xf]
        %v1195 = vld [vmem:[%s12] sm:$0xff]
        %v1196 = vpack.c.bf16 %v1191, %v1189
        %v1197 = vpack.c.bf16 %v1192, %v1190
        %vm1198 = vcmask 97280
        %v1200 = vsel %vm1198, %v1193, 0
        %vm1202 = vcmask 1045504
        %v1204 = vsel %vm1202, %v1196, 0
        %v1207 = vsel %vm1202, %v1197, 0
        %1209 = vmatprep.subr.bf16.mxu0 %v1207
        %1210 = vmatpush1.bf16.msra.mxu0 %v1204
        %1211 = vmatprep.subr.bf16.mxu0 0
        %1212 = vmatpush1.bf16.msra.mxu0 0
        %1213 = vmatprep.subr.bf16.mxu0 0
        %1214 = vmatpush1.bf16.msra.mxu0 0
        %1215 = vmatprep.subr.bf16.mxu0 0
        %1216 = vmatpush1.bf16.msra.mxu0 0
        %1217 = vmatprep.subr.bf16.mxu0 0
        %1218 = vmatpush1.bf16.msra.mxu0 0
        %1219 = vmatprep.subr.bf16.mxu0 0
        %1220 = vmatpush1.bf16.msra.mxu0 0
        %1221 = vmatprep.subr.bf16.mxu0 0
        %1222 = vmatpush1.bf16.msra.mxu0 0
        %1223 = vmatprep.subr.bf16.mxu0 0
        %1224 = vmatpush1.bf16.msra.mxu0 0
        %1225 = vmatprep.subr.bf16.mxu0 0
        %1226 = vmatpush1.bf16.msra.mxu0 0
        %1227 = vmatprep.subr.bf16.mxu0 0
        %1228 = vmatpush1.bf16.msra.mxu0 0
        %1229 = vmatprep.subr.bf16.mxu0 0
        %1230 = vmatpush1.bf16.msra.mxu0 0
        %1231 = vmatprep.subr.bf16.mxu0 0
        %1232 = vmatpush1.bf16.msra.mxu0 0
        %1233 = vmatprep.subr.bf16.mxu0 0
        %1234 = vmatpush1.bf16.msra.mxu0 0
        %1235 = vmatprep.subr.bf16.mxu0 0
        %1236 = vmatpush1.bf16.msra.mxu0 0
        %1237 = vmatprep.subr.bf16.mxu0 0
        %1238 = vmatpush1.bf16.msra.mxu0 0
        %1239 = vmatprep.subr.bf16.mxu0 0
        %1240 = vmatpush1.bf16.msra.mxu0 0
        %1241 = vmatprep.mubr.bf16.mxu0 0
        %1242 = vmatmul.mubr.bf16.gmra.mrb[0].mxu0 %v1200
        %v1243 = vpop.f32.mrb[0].mxu0
        %v1244 = vadd.f32 0.0, %v1243
        %v1245 = vpop.f32.mrb[0].mxu0
        %v1246 = vadd.f32 0.0, %v1245
        %v1247 = vpop.f32.mrb[0].mxu0
        %v1248 = vpop.f32.mrb[0].mxu0
        %1249 = vdwg.mxu0
        %v1250 = vadd.f32 %v1187, %v1244
        %v1251 = vadd.f32 %v1188, %v1246
        %v1252 = vpack.c.bf16 %v1250, %v1250
        %v1253 = vpack.c.bf16 %v1251, %v1251
        %1255 = vset.pattern.permute.xlu0 0
        %1256 = vperm.xlu0 %1255, %v1195
        %v1257 = vpop.permute.xlu0 %1256
        %vm1259 = vcmask 64512
        %v1261 = vsel %vm1259, %v1194, 0
        %v1264 = vsel %vm932, %v1252, 0
        %v1267 = vsel %vm932, %v1253, 0
        %1269 = vmatprep.subr.bf16.mxu0 %v1267
        %1270 = vmatpush1.bf16.msra.mxu0 %v1264
        %1271 = vmatprep.subr.bf16.mxu0 0
        %1272 = vmatpush1.bf16.msra.mxu0 0
        %1273 = vmatprep.subr.bf16.mxu0 0
        %1274 = vmatpush1.bf16.msra.mxu0 0
        %1275 = vmatprep.subr.bf16.mxu0 0
        %1276 = vmatpush1.bf16.msra.mxu0 0
        %1277 = vmatprep.subr.bf16.mxu0 0
        %1278 = vmatpush1.bf16.msra.mxu0 0
        %1279 = vmatprep.subr.bf16.mxu0 0
        %1280 = vmatpush1.bf16.msra.mxu0 0
        %1281 = vmatprep.subr.bf16.mxu0 0
        %1282 = vmatpush1.bf16.msra.mxu0 0
        %1283 = vmatprep.subr.bf16.mxu0 0
        %1284 = vmatpush1.bf16.msra.mxu0 0
        %1285 = vmatprep.subr.bf16.mxu0 0
        %1286 = vmatpush1.bf16.msra.mxu0 0
        %1287 = vmatprep.subr.bf16.mxu0 0
        %1288 = vmatpush1.bf16.msra.mxu0 0
        %1289 = vmatprep.subr.bf16.mxu0 0
        %1290 = vmatpush1.bf16.msra.mxu0 0
        %1291 = vmatprep.subr.bf16.mxu0 0
        %1292 = vmatpush1.bf16.msra.mxu0 0
        %1293 = vmatprep.subr.bf16.mxu0 0
        %1294 = vmatpush1.bf16.msra.mxu0 0
        %1295 = vmatprep.subr.bf16.mxu0 0
        %1296 = vmatpush1.bf16.msra.mxu0 0
        %1297 = vmatprep.subr.bf16.mxu0 0
        %1298 = vmatpush1.bf16.msra.mxu0 0
        %1299 = vmatprep.subr.bf16.mxu0 0
        %1300 = vmatpush1.bf16.msra.mxu0 0
        %1301 = vmatprep.mubr.bf16.mxu0 0
        %1302 = vmatmul.mubr.bf16.gmra.mrb[0].mxu0 %v1261
        %v1303 = vpop.f32.mrb[0].mxu0
        %v1304 = vadd.f32 %v1257, %v1303
        %v1305 = vpop.f32.mrb[0].mxu0
        %v1306 = vadd.f32 %v1257, %v1305
        %v1307 = vpop.f32.mrb[0].mxu0
        %v1308 = vpop.f32.mrb[0].mxu0
        %1309 = vdwg.mxu0
        %v1310 = vmax.f32 %v1304, 0.0
        %v1311 = vmax.f32 %v1306, 0.0
        %v1312 = vld [vmem:[%s875] sm:$0xff]
        %v1313 = vld [vmem:[%s875 + $0x8] sm:$0xff]
        %v1314 = vld [vmem:[%s14] sm:$0xf]
        %v1315 = vld [vmem:[%s15] sm:$0x3]
        %v1316 = vld [vmem:[%s16] sm:$0xf]
        %v1317 = vpack.c.bf16 %v1312, %v1312
        %v1318 = vpack.c.bf16 %v1313, %v1313
        %v1320 = vsel %vm1259, %v1314, 0
        %v1323 = vsel %vm932, %v1317, 0
        %v1326 = vsel %vm932, %v1318, 0
        %1328 = vmatprep.subr.bf16.mxu0 %v1326
        %1329 = vmatpush1.bf16.msra.mxu0 %v1323
        %1330 = vmatprep.subr.bf16.mxu0 0
        %1331 = vmatpush1.bf16.msra.mxu0 0
        %1332 = vmatprep.subr.bf16.mxu0 0
        %1333 = vmatpush1.bf16.msra.mxu0 0
        %1334 = vmatprep.subr.bf16.mxu0 0
        %1335 = vmatpush1.bf16.msra.mxu0 0
        %1336 = vmatprep.subr.bf16.mxu0 0
        %1337 = vmatpush1.bf16.msra.mxu0 0
        %1338 = vmatprep.subr.bf16.mxu0 0
        %1339 = vmatpush1.bf16.msra.mxu0 0
        %1340 = vmatprep.subr.bf16.mxu0 0
        %1341 = vmatpush1.bf16.msra.mxu0 0
        %1342 = vmatprep.subr.bf16.mxu0 0
        %1343 = vmatpush1.bf16.msra.mxu0 0
        %1344 = vmatprep.subr.bf16.mxu0 0
        %1345 = vmatpush1.bf16.msra.mxu0 0
        %1346 = vmatprep.subr.bf16.mxu0 0
        %1347 = vmatpush1.bf16.msra.mxu0 0
        %1348 = vmatprep.subr.bf16.mxu0 0
        %1349 = vmatpush1.bf16.msra.mxu0 0
        %1350 = vmatprep.subr.bf16.mxu0 0
        %1351 = vmatpush1.bf16.msra.mxu0 0
        %1352 = vmatprep.subr.bf16.mxu0 0
        %1353 = vmatpush1.bf16.msra.mxu0 0
        %1354 = vmatprep.subr.bf16.mxu0 0
        %1355 = vmatpush1.bf16.msra.mxu0 0
        %1356 = vmatprep.subr.bf16.mxu0 0
        %1357 = vmatpush1.bf16.msra.mxu0 0
        %1358 = vmatprep.subr.bf16.mxu0 0
        %1359 = vmatpush1.bf16.msra.mxu0 0
        %1360 = vmatprep.mubr.bf16.mxu0 0
        %1361 = vmatmul.mubr.bf16.gmra.mrb[0].mxu0 %v1320
        %v1362 = vpop.f32.mrb[0].mxu0
        %v1363 = vadd.f32 0.0, %v1362
        %v1364 = vpop.f32.mrb[0].mxu0
        %v1365 = vadd.f32 0.0, %v1364
        %v1366 = vpop.f32.mrb[0].mxu0
        %v1367 = vpop.f32.mrb[0].mxu0
        %1368 = vdwg.mxu0
        %v1369 = vadd.f32 %v1310, %v1363
        %v1370 = vadd.f32 %v1311, %v1365
        %v1371 = vpack.c.bf16 %v1369, %v1369
        %v1372 = vpack.c.bf16 %v1370, %v1370
        %1374 = vset.pattern.permute.xlu0 0
        %1375 = vperm.xlu0 %1374, %v1316
        %v1376 = vpop.permute.xlu0 %1375
        %v1379 = vsel %vm1259, %v1315, 0
        %v1382 = vsel %vm932, %v1371, 0
        %v1385 = vsel %vm932, %v1372, 0
        %1387 = vmatprep.subr.bf16.mxu0 %v1385
        %1388 = vmatpush1.bf16.msra.mxu0 %v1382
        %1389 = vmatprep.subr.bf16.mxu0 0
        %1390 = vmatpush1.bf16.msra.mxu0 0
        %1391 = vmatprep.subr.bf16.mxu0 0
        %1392 = vmatpush1.bf16.msra.mxu0 0
        %1393 = vmatprep.subr.bf16.mxu0 0
        %1394 = vmatpush1.bf16.msra.mxu0 0
        %1395 = vmatprep.subr.bf16.mxu0 0
        %1396 = vmatpush1.bf16.msra.mxu0 0
        %1397 = vmatprep.subr.bf16.mxu0 0
        %1398 = vmatpush1.bf16.msra.mxu0 0
        %1399 = vmatprep.subr.bf16.mxu0 0
        %1400 = vmatpush1.bf16.msra.mxu0 0
        %1401 = vmatprep.subr.bf16.mxu0 0
        %1402 = vmatpush1.bf16.msra.mxu0 0
        %1403 = vmatprep.subr.bf16.mxu0 0
        %1404 = vmatpush1.bf16.msra.mxu0 0
        %1405 = vmatprep.subr.bf16.mxu0 0
        %1406 = vmatpush1.bf16.msra.mxu0 0
        %1407 = vmatprep.subr.bf16.mxu0 0
        %1408 = vmatpush1.bf16.msra.mxu0 0
        %1409 = vmatprep.subr.bf16.mxu0 0
        %1410 = vmatpush1.bf16.msra.mxu0 0
        %1411 = vmatprep.subr.bf16.mxu0 0
        %1412 = vmatpush1.bf16.msra.mxu0 0
        %1413 = vmatprep.subr.bf16.mxu0 0
        %1414 = vmatpush1.bf16.msra.mxu0 0
        %1415 = vmatprep.subr.bf16.mxu0 0
        %1416 = vmatpush1.bf16.msra.mxu0 0
        %1417 = vmatprep.subr.bf16.mxu0 0
        %1418 = vmatpush1.bf16.msra.mxu0 0
        %1419 = vmatprep.mubr.bf16.mxu0 0
        %1420 = vmatmul.mubr.bf16.gmra.mrb[0].mxu0 %v1379
        %v1421 = vpop.f32.mrb[0].mxu0
        %v1422 = vadd.f32 %v1376, %v1421
        %v1423 = vpop.f32.mrb[0].mxu0
        %v1424 = vadd.f32 %v1376, %v1423
        %v1425 = vpop.f32.mrb[0].mxu0
        %v1426 = vpop.f32.mrb[0].mxu0
        %1427 = vdwg.mxu0
        %v1428 = vmax.f32 %v1422, 0.0
        %v1429 = vmax.f32 %v1424, 0.0
        %v1430 = vld [vmem:[%s885] sm:$0x3f]
        %v1431 = vld [vmem:[%s885 + $0x8] sm:$0x3f]
        %v1432 = vld [vmem:[%s18] sm:$0x3]
        %v1433 = vpack.c.bf16 %v1430, %v1430
        %v1434 = vpack.c.bf16 %v1431, %v1431
        %vm1435 = vcmask 48128
        %v1437 = vsel %vm1435, %v1432, 0
        %vm1439 = vcmask 1042432
        %v1441 = vsel %vm1439, %v1433, 0
        %v1444 = vsel %vm1439, %v1434, 0
        %1446 = vmatprep.subr.bf16.mxu0 %v1444
        %1447 = vmatpush1.bf16.msra.mxu0 %v1441
        %1448 = vmatprep.subr.bf16.mxu0 0
        %1449 = vmatpush1.bf16.msra.mxu0 0
        %1450 = vmatprep.subr.bf16.mxu0 0
        %1451 = vmatpush1.bf16.msra.mxu0 0
        %1452 = vmatprep.subr.bf16.mxu0 0
        %1453 = vmatpush1.bf16.msra.mxu0 0
        %1454 = vmatprep.subr.bf16.mxu0 0
        %1455 = vmatpush1.bf16.msra.mxu0 0
        %1456 = vmatprep.subr.bf16.mxu0 0
        %1457 = vmatpush1.bf16.msra.mxu0 0
        %1458 = vmatprep.subr.bf16.mxu0 0
        %1459 = vmatpush1.bf16.msra.mxu0 0
        %1460 = vmatprep.subr.bf16.mxu0 0
        %1461 = vmatpush1.bf16.msra.mxu0 0
        %1462 = vmatprep.subr.bf16.mxu0 0
        %1463 = vmatpush1.bf16.msra.mxu0 0
        %1464 = vmatprep.subr.bf16.mxu0 0
        %1465 = vmatpush1.bf16.msra.mxu0 0
        %1466 = vmatprep.subr.bf16.mxu0 0
        %1467 = vmatpush1.bf16.msra.mxu0 0
        %1468 = vmatprep.subr.bf16.mxu0 0
        %1469 = vmatpush1.bf16.msra.mxu0 0
        %1470 = vmatprep.subr.bf16.mxu0 0
        %1471 = vmatpush1.bf16.msra.mxu0 0
        %1472 = vmatprep.subr.bf16.mxu0 0
        %1473 = vmatpush1.bf16.msra.mxu0 0
        %1474 = vmatprep.subr.bf16.mxu0 0
        %1475 = vmatpush1.bf16.msra.mxu0 0
        %1476 = vmatprep.subr.bf16.mxu0 0
        %1477 = vmatpush1.bf16.msra.mxu0 0
        %1478 = vmatprep.mubr.bf16.mxu0 0
        %1479 = vmatmul.mubr.bf16.gmra.mrb[0].mxu0 %v1437
        %v1480 = vpop.f32.mrb[0].mxu0
        %v1481 = vadd.f32 0.0, %v1480
        %v1482 = vpop.f32.mrb[0].mxu0
        %v1483 = vadd.f32 0.0, %v1482
        %v1484 = vpop.f32.mrb[0].mxu0
        %v1485 = vpop.f32.mrb[0].mxu0
        %1486 = vdwg.mxu0
        %v1487 = vadd.f32 %v1428, %v1481
        %v1488 = vadd.f32 %v1429, %v1483
        %v1491 = vcombine.low %v1487, %v1488
        %1493 = vst [vmem:[%s835] sm:$0xff] %v1491
        %s1494 = sand.u32 %s502, 1
        %s1495 = scalar_lea.sflag [#allocation4], %s1494
        %s1496 = sand.u32 %s502, 1
        %s1497 = smul.addr %s1496, 8
        %s1498 = scalar_lea.vmem [#allocation13], %s1497
        // Predicated region
        $region121: #{tpu_custom_call.1} parent=95 // pred_check
          %p1499 = pneg %p512
        $region122: #{tpu_custom_call.1} parent=95 // pred_check_branch
          %1501 = sbr.rel (%p1499) target = $region124
        $region123: #{tpu_custom_call.1} parent=95 // pred_region
          %s1502 = smul.u32 2, %s44
          %s1504 = ssub.s32 128, 128
          %1505 = vsyncadd %s1495, %s1504
          %s1506 = smul.addr %s43, 2
          %s1507 = sadd.s32 %s1502, %s1506
          %s1508 = smul.addr %s1507, 64
          %s1509 = scalar_lea.hbm %s19, %s1508
          %s1511 = sshll.u32 %s1498, 4
          %s1512 = int_to_ptr.vmem [resolvable:$true] %s1511
          %1514 = dma.vmem_to_hbm [thread:$0]  %s1512, 128, %s1509, %s1495
        $region124: #{tpu_custom_call.1} parent=95 // pred_fallthru
          _
      $region96: #{tpu_custom_call.1} parent=5 // pred_fallthru
        _
      %p1515 = scmp.le.s32.totalorder 2, %s34
      // Predicated region
      $region125: #{tpu_custom_call.1} parent=5 // pred_check
        %p1516 = pneg %p1515
      $region126: #{tpu_custom_call.1} parent=5 // pred_check_branch
        %1518 = sbr.rel (%p1516) target = $region128
      $region127: #{tpu_custom_call.1} parent=5 // pred_region
        %s1519 = ssub.s32 %s34, 2
        // Predicated region
        $region129: #{tpu_custom_call.1} parent=127 // pred_check
          %p1520 = pneg %p518
        $region130: #{tpu_custom_call.1} parent=127 // pred_check_branch
          %1522 = sbr.rel (%p1520) target = $region132
        $region131: #{tpu_custom_call.1} parent=127 // pred_region
          %s1523 = sand.u32 %s503, 1
          %s1524 = scalar_lea.sflag [#allocation4], %s1523
          %s1525 = sand.u32 %s503, 1
          %s1526 = smul.addr %s1525, 8
          %s1527 = scalar_lea.vmem [#allocation13], %s1526
          %1528 = dma.done %s1524, 128
        $region132: #{tpu_custom_call.1} parent=127 // pred_fallthru
          _
      $region128: #{tpu_custom_call.1} parent=5 // pred_fallthru
        _
    $region6: #{tpu_custom_call.1} parent=1 // loop_footer
      %s38 = sadd.s32 1, %s34
    $region7: #{tpu_custom_call.1} parent=1 // loop_footer_branch
      %33 = sbr.rel target = $region3
    $region8: #{tpu_custom_call.1} parent=1 // loop_exit
      _
    %1529 = vsyncpa [#allocation3], 1
    %s1530 = scalar_lea.sflag [#allocation3], 1
    %1531 = vsyncpa %s1530, 1
    %1532 = vsyncpa [#allocation6], 1
    %s1533 = scalar_lea.sflag [#allocation6], 1
    %1534 = vsyncpa %s1533, 1
    %1535 = vsyncpa [#allocation9], 1
    %1536 = vsyncpa [#allocation12], 1
    %1537 = vsyncpa [#allocation4], 1
    %s1538 = scalar_lea.sflag [#allocation4], 1
    %1539 = vsyncpa %s1538, 1

</llo_original>
